<compile_context>
chip_gen: v5e
topology: v5e:2x2
jax: 0.10.0
libtpu: 0.0.40
codegen_flags: <defaults>
</compile_context>

<pallas_src>
import functools
import math

import jax
import jax.numpy as jnp
from jax import lax
from jax.experimental import pallas as pl
from jax.experimental.pallas import tpu as pltpu


# ---------------------------------------------------------------------------
# Pallas kernel 1: fused matmul (bf16 MXU inputs, f32 accumulate) + bias + act
# ---------------------------------------------------------------------------
def _mm_kernel(x_ref, w_ref, b_ref, o_ref, *, act):
    acc = jnp.dot(x_ref[...], w_ref[...], preferred_element_type=jnp.float32)
    acc = acc + b_ref[...]
    if act == "relu":
        acc = jnp.maximum(acc, 0.0)
    elif act == "silu":
        acc = acc * jax.nn.sigmoid(acc)
    elif act == "sigmoid":
        acc = jax.nn.sigmoid(acc)
    elif act == "softplus":
        acc = jax.nn.softplus(acc)
    o_ref[...] = acc


def matmul_fused(x, w, bias=None, act=None, tm=512):
    """act((x @ w) + bias); x:(M,K) f32, w:(K,N) f32 -> (M,N) f32."""
    M0, K = x.shape
    N = w.shape[1]
    M = M0
    if M % 8:                                   # pad only the remainder
        x = jnp.pad(x, ((0, 8 - M % 8), (0, 0)))
        M = x.shape[0]
    if M <= tm:
        tm = M
    elif M % tm:
        x = jnp.pad(x, ((0, tm - M % tm), (0, 0)))
        M = x.shape[0]
    b = bias if bias is not None else jnp.zeros((N,), jnp.float32)
    b = b.astype(jnp.float32).reshape(1, N)
    out = pl.pallas_call(
        functools.partial(_mm_kernel, act=act),
        out_shape=jax.ShapeDtypeStruct((M, N), jnp.float32),
        grid=(M // tm,),
        in_specs=[
            pl.BlockSpec((tm, K), lambda i: (i, 0)),
            pl.BlockSpec((K, N), lambda i: (0, 0)),
            pl.BlockSpec((1, N), lambda i: (0, 0)),
        ],
        out_specs=pl.BlockSpec((tm, N), lambda i: (i, 0)),
        compiler_params=pltpu.CompilerParams(
            dimension_semantics=("parallel",),
            vmem_limit_bytes=48 * 1024 * 1024),
    )(x.astype(jnp.bfloat16), w.astype(jnp.bfloat16), b)
    return out[:M0]


# ---------------------------------------------------------------------------
# Pallas kernel 2: Mamba selective scan, dA / dBu formed in-kernel.
#   h[n,d] <- exp(dt[d]*A[d,n]) * h[n,d] + B[n] * (dt[d]*u[d])
#   y[d]    = sum_n C[n] * h[n,d] + Dvec[d] * u[d]
# Grid = (sequence, L-chunk).  State h lives in VMEM scratch and is carried
# across L-chunks (the L axis is "arbitrary"); sequences are "parallel".
# ---------------------------------------------------------------------------
def _scan_kernel(dt_ref, u_ref, bT_ref, c_ref, aT_ref, dvec_ref, o_ref, h_ref,
                 *, ts):
    @pl.when(pl.program_id(1) == 0)
    def _():
        h_ref[...] = jnp.zeros_like(h_ref)

    A_T = aT_ref[0]          # (N, D)   resident
    dvec = dvec_ref[0]       # (1, D)   resident
    bT = bT_ref[0]           # (N, TL)  B values, state-dim on sublanes
    TL = dt_ref.shape[1]
    nblk = TL // ts

    # one-hot column selectors (hoisted; rebuilt per ts-block with the offset)
    lane_ids = lax.broadcasted_iota(jnp.int32, (TL, ts), 0)
    col_ids = lax.broadcasted_iota(jnp.int32, (TL, ts), 1)

    def body(blk, carry):
        base = pl.multiple_of(blk * ts, ts)
        # Extract ts consecutive B columns as (N, ts) via a tiny MXU matmul
        # (keeps everything in natural layouts, no lane-dynamic slicing).
        onehot = (lane_ids == col_ids + base).astype(jnp.float32)
        b_cols = jnp.dot(bT, onehot, preferred_element_type=jnp.float32)

        dt_blk = dt_ref[0, pl.ds(base, ts), :]     # (ts, D)
        u_blk = u_ref[0, pl.ds(base, ts), :]       # (ts, D)
        c_blk = c_ref[0, pl.ds(base, ts), :]       # (ts, N)

        h = h_ref[...]                             # (N, D)
        ys = []
        for j in range(ts):                        # short unrolled inner loop
            dt_row = dt_blk[j:j + 1, :]            # (1, D)
            u_row = u_blk[j:j + 1, :]              # (1, D)
            c_row = c_blk[j:j + 1, :]              # (1, N)
            b_col = b_cols[:, j:j + 1]             # (N, 1)
            w_row = dt_row * u_row                 # (1, D)
            dA = jnp.exp(dt_row * A_T)             # (N, D)   EUP
            h = dA * h + b_col * w_row             # rank-1 state update
            y = jnp.dot(c_row, h, preferred_element_type=jnp.float32)
            ys.append(y + dvec * u_row)            # (1, D)
        # one dense (ts, D) store per block instead of ts masked row stores
        o_ref[0, pl.ds(base, ts), :] = jnp.concatenate(ys, axis=0)
        h_ref[...] = h
        return carry

    lax.fori_loop(0, nblk, body, 0)


def selective_scan(dt, u, Bm, Cm, A_seq, D_seq):
    """dt,u:(S,L,D); Bm,Cm:(S,L,N); A_seq:(S,D,N); D_seq:(S,D) -> (S,L,D)."""
    S, L, Dm = u.shape
    N = A_seq.shape[2]
    BmT = jnp.transpose(Bm, (0, 2, 1))           # (S, N, L)
    A_T = jnp.transpose(A_seq, (0, 2, 1))        # (S, N, D)
    Dv = D_seq.reshape(S, 1, Dm)

    # chunk the sequence so VMEM stays bounded (v7x 64 MiB) at large L
    if L > 128 and L % 128 == 0:
        TL = 128
    else:
        TL = L
    ts = math.gcd(TL, 8)

    out = pl.pallas_call(
        functools.partial(_scan_kernel, ts=ts),
        out_shape=jax.ShapeDtypeStruct((S, L, Dm), jnp.float32),
        grid=(S, L // TL),
        in_specs=[
            pl.BlockSpec((1, TL, Dm), lambda s, l: (s, l, 0)),   # dt
            pl.BlockSpec((1, TL, Dm), lambda s, l: (s, l, 0)),   # u
            pl.BlockSpec((1, N, TL), lambda s, l: (s, 0, l)),    # B (transposed)
            pl.BlockSpec((1, TL, N), lambda s, l: (s, l, 0)),    # C
            pl.BlockSpec((1, N, Dm), lambda s, l: (s, 0, 0)),    # A^T (resident)
            pl.BlockSpec((1, 1, Dm), lambda s, l: (s, 0, 0)),    # skip D
        ],
        out_specs=pl.BlockSpec((1, TL, Dm), lambda s, l: (s, l, 0)),
        scratch_shapes=[pltpu.VMEM((N, Dm), jnp.float32)],
        compiler_params=pltpu.CompilerParams(
            dimension_semantics=("parallel", "arbitrary"),
            vmem_limit_bytes=48 * 1024 * 1024),
    )(dt, u, BmT, Cm, A_T, Dv)
    return out


def selective_scan_ref(dt, u, Bm, Cm, A_seq, D_seq):
    """Pure-JAX reference for the scan kernel (f32, lax.scan)."""
    def one(dt_s, u_s, b_s, c_s, A, Dv):
        def step(h, inp):
            dt_t, u_t, b_t, c_t = inp
            dA = jnp.exp(dt_t[:, None] * A)                       # (D, N)
            h = dA * h + (dt_t * u_t)[:, None] * b_t[None, :]
            y = jnp.sum(c_t[None, :] * h, axis=1) + Dv * u_t
            return h, y
        h0 = jnp.zeros(A.shape, jnp.float32)
        _, ys = lax.scan(step, h0, (dt_s, u_s, b_s, c_s))
        return ys
    return jax.vmap(one)(dt, u, Bm, Cm, A_seq, D_seq)


# ---------------------------------------------------------------------------
# SMFB forward (glue in JAX, compute in the Pallas kernels above)
# ---------------------------------------------------------------------------
def silu(x):
    return x * jax.nn.sigmoid(x)


def causal_dconv1d(x, w, b):
    """Depthwise causal conv over the sequence axis.  x:(B,L,D), w:(D,K)."""
    K = w.shape[1]
    L = x.shape[1]
    xp = jnp.pad(x, ((0, 0), (K - 1, 0), (0, 0)))
    out = b[None, None, :]
    for k in range(K):
        out = out + xp[:, k:k + L, :] * w[None, None, :, k]
    return out


def conv1x1(x, pc, act=None):
    B, H, W, C = x.shape
    out = matmul_fused(x.reshape(B * H * W, C), pc["w"], bias=pc["b"], act=act)
    return out.reshape(B, H, W, pc["w"].shape[1])


def smfb_forward(p, x):
    """x: (B, H, W, C) NHWC."""
    B, H, W, C = x.shape
    Dm = C // 2
    L = H * W
    N = p["mambaF"]["A"].shape[1]

    x = conv1x1(x, p["to_x"])
    seq = x.reshape(B, L, C)
    seqR = jnp.flip(seq, axis=1)

    def prep(s, pp):
        xs, z = s[..., :Dm], s[..., Dm:]
        u = silu(causal_dconv1d(xs, pp["conv_w"], pp["conv_b"]))
        # folded lane-dense projection: [B | C | dt]  (width 2*d_state + Dm)
        proj = matmul_fused(u.reshape(B * L, Dm), pp["proj_w"], bias=pp["proj_b"])
        Bm = proj[:, :N].reshape(B, L, N)
        Cm = proj[:, N:2 * N].reshape(B, L, N)
        dt = jax.nn.softplus(proj[:, 2 * N:]).reshape(B, L, Dm)
        return u, dt, Bm, Cm, z

    uF, dtF, BmF, CmF, zF = prep(seq, p["mambaF"])
    uR, dtR, BmR, CmR, zR = prep(seqR, p["mambaR"])

    # batch forward + reverse streams into one scan launch (2B sequences)
    u_all = jnp.concatenate([uF, uR], axis=0)
    dt_all = jnp.concatenate([dtF, dtR], axis=0)
    Bm_all = jnp.concatenate([BmF, BmR], axis=0)
    Cm_all = jnp.concatenate([CmF, CmR], axis=0)
    A_all = jnp.concatenate([
        jnp.broadcast_to(p["mambaF"]["A"][None], (B, Dm, N)),
        jnp.broadcast_to(p["mambaR"]["A"][None], (B, Dm, N))], axis=0)
    D_all = jnp.concatenate([
        jnp.broadcast_to(p["mambaF"]["D"][None], (B, Dm)),
        jnp.broadcast_to(p["mambaR"]["D"][None], (B, Dm))], axis=0)

    y_all = selective_scan(dt_all, u_all, Bm_all, Cm_all, A_all, D_all)
    y_all = y_all * silu(jnp.concatenate([zF, zR], axis=0))
    yF = y_all[:B]
    yR = jnp.flip(y_all[B:], axis=1)

    y = jnp.concatenate([yF, yR], axis=-1).reshape(B, H, W, C)
    return conv1x1(y, p["proj"])


# ---------------------------------------------------------------------------
# Deterministic synthetic parameters
# ---------------------------------------------------------------------------
class ParamGen:
    def __init__(self, seed=0):
        self._key = jax.random.PRNGKey(seed)

    def take(self, shape, scale=0.1):
        self._key, sub = jax.random.split(self._key)
        return scale * jax.random.normal(sub, shape, jnp.float32)


def make_conv(pg, cin, cout):
    return {"w": pg.take((cin, cout)), "b": pg.take((cout,))}


def make_s6(pg, dm, n, k=4):
    r = max(1, math.ceil(dm / 16))
    a_log = jnp.log(jnp.broadcast_to(jnp.arange(1, n + 1, dtype=jnp.float32), (dm, n)))
    xproj_bc = pg.take((dm, 2 * n))
    xproj_dt = pg.take((dm, r))
    dtproj_w = pg.take((r, dm))
    dtproj_b = pg.take((dm,))
    # fold dt_proj into x_proj (linear of linear) at parameter-prep time
    w_comb = jnp.concatenate([xproj_bc, xproj_dt @ dtproj_w], axis=1)
    b_comb = jnp.concatenate([jnp.zeros((2 * n,), jnp.float32), dtproj_b])
    return {
        "conv_w": pg.take((dm, k)),
        "conv_b": pg.take((dm,)),
        "proj_w": w_comb,            # (dm, 2n + dm)
        "proj_b": b_comb,
        "A": -jnp.exp(a_log),        # (dm, n)
        "D": jnp.ones((dm,), jnp.float32),
    }


def make_smfb(pg, dim, d_state):
    return {"to_x": make_conv(pg, dim, dim),
            "mambaF": make_s6(pg, dim // 2, d_state),
            "mambaR": make_s6(pg, dim // 2, d_state),
            "proj": make_conv(pg, dim, dim)}


# ---------------------------------------------------------------------------
if __name__ == "__main__":
    dim, d_state = 32, 64
    B, H, W = 2, 16, 16

    key = jax.random.PRNGKey(0)
    k1, k2 = jax.random.split(key)
    # PyTorch reference layout is NCHW; generate NCHW then transpose to NHWC.
    x_nchw = jax.random.normal(k1, (B, dim, H, W), jnp.float32)
    x = jnp.transpose(x_nchw, (0, 2, 3, 1))

    params = make_smfb(ParamGen(42), dim, d_state)

    # --- self-check of the scan kernel (exercises the chunked / carried path)
    Dm, N, S, Lc = dim // 2, d_state, 2 * B, H * W
    kc = jax.random.split(k2, 6)
    dt_c = jax.nn.softplus(jax.random.normal(kc[0], (S, Lc, Dm), jnp.float32))
    u_c = jax.random.normal(kc[1], (S, Lc, Dm), jnp.float32)
    B_c = 0.5 * jax.random.normal(kc[2], (S, Lc, N), jnp.float32)
    C_c = 0.5 * jax.random.normal(kc[3], (S, Lc, N), jnp.float32)
    A_c = -jnp.exp(0.5 * jax.random.normal(kc[4], (S, Dm, N), jnp.float32))
    D_c = jax.random.normal(kc[5], (S, Dm), jnp.float32)
    y_k = jax.block_until_ready(selective_scan(dt_c, u_c, B_c, C_c, A_c, D_c))
    y_r = selective_scan_ref(dt_c, u_c, B_c, C_c, A_c, D_c)
    rel = float(jnp.max(jnp.abs(y_k - y_r)) / (jnp.max(jnp.abs(y_r)) + 1e-6))
    assert rel < 5e-2, f"scan kernel mismatch, rel err {rel}"

    # --- full SMFB forward
    out = jax.block_until_ready(jax.jit(smfb_forward)(params, x))
    assert out.shape == (B, H, W, dim)
    assert bool(jnp.all(jnp.isfinite(out)))
    print("KERNEL_OK")
</pallas_src>

<mosaic_0001>
module attributes {stable_mosaic.version = 11 : i64} {
  func.func @_scan_kernel(%arg0: i32, %arg1: i32, %arg2: memref<1x128x16xf32, #tpu.memory_space<vmem>>, %arg3: memref<1x128x16xf32, #tpu.memory_space<vmem>>, %arg4: memref<1x64x128xf32, #tpu.memory_space<vmem>>, %arg5: memref<1x128x64xf32, #tpu.memory_space<vmem>>, %arg6: memref<1x64x16xf32, #tpu.memory_space<vmem>>, %arg7: memref<1x1x16xf32, #tpu.memory_space<vmem>>, %arg8: memref<1x128x16xf32, #tpu.memory_space<vmem>>, %arg9: memref<64x16xf32, #tpu.memory_space<vmem>>) attributes {dimension_semantics = [#tpu.dimension_semantics<parallel>, #tpu.dimension_semantics<arbitrary>], iteration_bounds = array<i64: 4, 2>, scalar_prefetch = 0 : i64, scratch_operands = 1 : i64, tpu.core_type = #tpu.core_type<tc>, window_params = [{transform_indices = @transform_0, window_bounds = array<i64: 1, 128, 16>}, {transform_indices = @transform_1, window_bounds = array<i64: 1, 128, 16>}, {transform_indices = @transform_2, window_bounds = array<i64: 1, 64, 128>}, {transform_indices = @transform_3, window_bounds = array<i64: 1, 128, 64>}, {transform_indices = @transform_4, window_bounds = array<i64: 1, 64, 16>}, {transform_indices = @transform_5, window_bounds = array<i64: 1, 1, 16>}, {transform_indices = @transform_6, window_bounds = array<i64: 1, 128, 16>}]} {
    %c0_i32 = arith.constant 0 : i32
    %0 = arith.cmpi eq, %arg1, %c0_i32 : i32
    %1 = arith.extui %0 : i1 to i32
    %c0_i32_0 = arith.constant 0 : i32
    %2 = arith.cmpi ne, %1, %c0_i32_0 : i32
    scf.if %2 {
      %cst = arith.constant 0.000000e+00 : f32
      %12 = vector.broadcast %cst : f32 to vector<64x16xf32>
      %c0_11 = arith.constant 0 : index
      %c0_12 = arith.constant 0 : index
      %13 = vector.load %arg9[%c0_11, %c0_12] : memref<64x16xf32, #tpu.memory_space<vmem>>, vector<64x16xf32>
      tpu.vector_store %arg9[%c0_11, %c0_12], %12 {strides = array<i32>} : memref<64x16xf32, #tpu.memory_space<vmem>>, vector<64x16xf32>,
    } else {
    }
    %c0 = arith.constant 0 : index
    %c0_1 = arith.constant 0 : index
    %c0_2 = arith.constant 0 : index
    %3 = vector.load %arg6[%c0, %c0_1, %c0_2] : memref<1x64x16xf32, #tpu.memory_space<vmem>>, vector<1x64x16xf32>
    %4 = vector.shape_cast %3 : vector<1x64x16xf32> to vector<64x16xf32>
    %c0_3 = arith.constant 0 : index
    %c0_4 = arith.constant 0 : index
    %c0_5 = arith.constant 0 : index
    %5 = vector.load %arg7[%c0_3, %c0_4, %c0_5] : memref<1x1x16xf32, #tpu.memory_space<vmem>>, vector<1x1x16xf32>
    %6 = vector.shape_cast %5 : vector<1x1x16xf32> to vector<1x16xf32>
    %c0_6 = arith.constant 0 : index
    %c0_7 = arith.constant 0 : index
    %c0_8 = arith.constant 0 : index
    %7 = vector.load %arg4[%c0_6, %c0_7, %c0_8] : memref<1x64x128xf32, #tpu.memory_space<vmem>>, vector<1x64x128xf32>
    %8 = vector.shape_cast %7 : vector<1x64x128xf32> to vector<64x128xf32>
    %9 = tpu.iota {dimensions = array<i32: 0>} : vector<128x8xi32>
    %10 = tpu.iota {dimensions = array<i32: 1>} : vector<128x8xi32>
    %c0_i32_9 = arith.constant 0 : i32
    %c16_i32 = arith.constant 16 : i32
    %11 = arith.addi %c0_i32_9, %c16_i32 : i32
    %c1_i32 = arith.constant 1 : i32
    scf.for %arg10 = %c0_i32_9 to %11 step %c1_i32  : i32 {
      %c8_i32 = arith.constant 8 : i32
      %12 = arith.muli %arg10, %c8_i32 : i32
      %13 = tpu.assume_multiple %12, 8 : i32
      %14 = vector.broadcast %13 : i32 to vector<128x8xi32>
      %15 = arith.addi %10, %14 : vector<128x8xi32>
      %16 = arith.cmpi eq, %9, %15 : vector<128x8xi32>
      %17 = arith.extui %16 : vector<128x8xi1> to vector<128x8xi32>
      %18 = arith.sitofp %17 : vector<128x8xi32> to vector<128x8xf32>
      %cst = arith.constant dense<0.000000e+00> : vector<64x8xf32>
      %19 = tpu.matmul %8, %18, %cst {dimension_numbers = #tpu.dot_dimension_numbers<[1], [0], [0], [1], [0, 0, 1, 1], [], []>} : vector<64x128xf32>, vector<128x8xf32>, vector<64x8xf32> -> vector<64x8xf32>
      %c0_11 = arith.constant 0 : index
      %20 = arith.index_cast %13 : i32 to index
      %c0_12 = arith.constant 0 : index
      %21 = vector.load %arg2[%c0_11, %20, %c0_12] : memref<1x128x16xf32, #tpu.memory_space<vmem>>, vector<1x8x16xf32>
      %22 = vector.shape_cast %21 : vector<1x8x16xf32> to vector<8x16xf32>
      %c0_13 = arith.constant 0 : index
      %23 = arith.index_cast %13 : i32 to index
      %c0_14 = arith.constant 0 : index
      %24 = vector.load %arg3[%c0_13, %23, %c0_14] : memref<1x128x16xf32, #tpu.memory_space<vmem>>, vector<1x8x16xf32>
      %25 = vector.shape_cast %24 : vector<1x8x16xf32> to vector<8x16xf32>
      %c0_15 = arith.constant 0 : index
      %26 = arith.index_cast %13 : i32 to index
      %c0_16 = arith.constant 0 : index
      %27 = vector.load %arg5[%c0_15, %26, %c0_16] : memref<1x128x64xf32, #tpu.memory_space<vmem>>, vector<1x8x64xf32>
      %28 = vector.shape_cast %27 : vector<1x8x64xf32> to vector<8x64xf32>
      %c0_17 = arith.constant 0 : index
      %c0_18 = arith.constant 0 : index
      %29 = vector.load %arg9[%c0_17, %c0_18] : memref<64x16xf32, #tpu.memory_space<vmem>>, vector<64x16xf32>
      %30 = vector.extract_strided_slice %22 {offsets = [0, 0], sizes = [1, 16], strides = [1, 1]} : vector<8x16xf32> to vector<1x16xf32>
      %31 = vector.extract_strided_slice %25 {offsets = [0, 0], sizes = [1, 16], strides = [1, 1]} : vector<8x16xf32> to vector<1x16xf32>
      %32 = vector.extract_strided_slice %28 {offsets = [0, 0], sizes = [1, 64], strides = [1, 1]} : vector<8x64xf32> to vector<1x64xf32>
      %33 = vector.extract_strided_slice %19 {offsets = [0, 0], sizes = [64, 1], strides = [1, 1]} : vector<64x8xf32> to vector<64x1xf32>
      %34 = arith.mulf %30, %31 : vector<1x16xf32>
      %35 = vector.broadcast %30 : vector<1x16xf32> to vector<64x16xf32>
      %36 = arith.mulf %35, %4 : vector<64x16xf32>
      %37 = math.exp %36 : vector<64x16xf32>
      %38 = arith.mulf %37, %29 : vector<64x16xf32>
      %39 = vector.broadcast %33 : vector<64x1xf32> to vector<64x16xf32>
      %40 = vector.broadcast %34 : vector<1x16xf32> to vector<64x16xf32>
      %41 = arith.mulf %39, %40 : vector<64x16xf32>
      %42 = arith.addf %38, %41 : vector<64x16xf32>
      %cst_19 = arith.constant dense<0.000000e+00> : vector<1x16xf32>
      %43 = tpu.matmul %32, %42, %cst_19 {dimension_numbers = #tpu.dot_dimension_numbers<[1], [0], [0], [1], [0, 0, 1, 1], [], []>} : vector<1x64xf32>, vector<64x16xf32>, vector<1x16xf32> -> vector<1x16xf32>
      %44 = arith.mulf %6, %31 : vector<1x16xf32>
      %45 = arith.addf %43, %44 : vector<1x16xf32>
      %46 = vector.extract_strided_slice %22 {offsets = [1, 0], sizes = [1, 16], strides = [1, 1]} : vector<8x16xf32> to vector<1x16xf32>
      %47 = vector.extract_strided_slice %25 {offsets = [1, 0], sizes = [1, 16], strides = [1, 1]} : vector<8x16xf32> to vector<1x16xf32>
      %48 = vector.extract_strided_slice %28 {offsets = [1, 0], sizes = [1, 64], strides = [1, 1]} : vector<8x64xf32> to vector<1x64xf32>
      %49 = vector.extract_strided_slice %19 {offsets = [0, 1], sizes = [64, 1], strides = [1, 1]} : vector<64x8xf32> to vector<64x1xf32>
      %50 = arith.mulf %46, %47 : vector<1x16xf32>
      %51 = vector.broadcast %46 : vector<1x16xf32> to vector<64x16xf32>
      %52 = arith.mulf %51, %4 : vector<64x16xf32>
      %53 = math.exp %52 : vector<64x16xf32>
      %54 = arith.mulf %53, %42 : vector<64x16xf32>
      %55 = vector.broadcast %49 : vector<64x1xf32> to vector<64x16xf32>
      %56 = vector.broadcast %50 : vector<1x16xf32> to vector<64x16xf32>
      %57 = arith.mulf %55, %56 : vector<64x16xf32>
      %58 = arith.addf %54, %57 : vector<64x16xf32>
      %cst_20 = arith.constant dense<0.000000e+00> : vector<1x16xf32>
      %59 = tpu.matmul %48, %58, %cst_20 {dimension_numbers = #tpu.dot_dimension_numbers<[1], [0], [0], [1], [0, 0, 1, 1], [], []>} : vector<1x64xf32>, vector<64x16xf32>, vector<1x16xf32> -> vector<1x16xf32>
      %60 = arith.mulf %6, %47 : vector<1x16xf32>
      %61 = arith.addf %59, %60 : vector<1x16xf32>
      %62 = vector.extract_strided_slice %22 {offsets = [2, 0], sizes = [1, 16], strides = [1, 1]} : vector<8x16xf32> to vector<1x16xf32>
      %63 = vector.extract_strided_slice %25 {offsets = [2, 0], sizes = [1, 16], strides = [1, 1]} : vector<8x16xf32> to vector<1x16xf32>
      %64 = vector.extract_strided_slice %28 {offsets = [2, 0], sizes = [1, 64], strides = [1, 1]} : vector<8x64xf32> to vector<1x64xf32>
      %65 = vector.extract_strided_slice %19 {offsets = [0, 2], sizes = [64, 1], strides = [1, 1]} : vector<64x8xf32> to vector<64x1xf32>
      %66 = arith.mulf %62, %63 : vector<1x16xf32>
      %67 = vector.broadcast %62 : vector<1x16xf32> to vector<64x16xf32>
      %68 = arith.mulf %67, %4 : vector<64x16xf32>
      %69 = math.exp %68 : vector<64x16xf32>
      %70 = arith.mulf %69, %58 : vector<64x16xf32>
      %71 = vector.broadcast %65 : vector<64x1xf32> to vector<64x16xf32>
      %72 = vector.broadcast %66 : vector<1x16xf32> to vector<64x16xf32>
      %73 = arith.mulf %71, %72 : vector<64x16xf32>
      %74 = arith.addf %70, %73 : vector<64x16xf32>
      %cst_21 = arith.constant dense<0.000000e+00> : vector<1x16xf32>
      %75 = tpu.matmul %64, %74, %cst_21 {dimension_numbers = #tpu.dot_dimension_numbers<[1], [0], [0], [1], [0, 0, 1, 1], [], []>} : vector<1x64xf32>, vector<64x16xf32>, vector<1x16xf32> -> vector<1x16xf32>
      %76 = arith.mulf %6, %63 : vector<1x16xf32>
      %77 = arith.addf %75, %76 : vector<1x16xf32>
      %78 = vector.extract_strided_slice %22 {offsets = [3, 0], sizes = [1, 16], strides = [1, 1]} : vector<8x16xf32> to vector<1x16xf32>
      %79 = vector.extract_strided_slice %25 {offsets = [3, 0], sizes = [1, 16], strides = [1, 1]} : vector<8x16xf32> to vector<1x16xf32>
      %80 = vector.extract_strided_slice %28 {offsets = [3, 0], sizes = [1, 64], strides = [1, 1]} : vector<8x64xf32> to vector<1x64xf32>
      %81 = vector.extract_strided_slice %19 {offsets = [0, 3], sizes = [64, 1], strides = [1, 1]} : vector<64x8xf32> to vector<64x1xf32>
      %82 = arith.mulf %78, %79 : vector<1x16xf32>
      %83 = vector.broadcast %78 : vector<1x16xf32> to vector<64x16xf32>
      %84 = arith.mulf %83, %4 : vector<64x16xf32>
      %85 = math.exp %84 : vector<64x16xf32>
      %86 = arith.mulf %85, %74 : vector<64x16xf32>
      %87 = vector.broadcast %81 : vector<64x1xf32> to vector<64x16xf32>
      %88 = vector.broadcast %82 : vector<1x16xf32> to vector<64x16xf32>
      %89 = arith.mulf %87, %88 : vector<64x16xf32>
      %90 = arith.addf %86, %89 : vector<64x16xf32>
      %cst_22 = arith.constant dense<0.000000e+00> : vector<1x16xf32>
      %91 = tpu.matmul %80, %90, %cst_22 {dimension_numbers = #tpu.dot_dimension_numbers<[1], [0], [0], [1], [0, 0, 1, 1], [], []>} : vector<1x64xf32>, vector<64x16xf32>, vector<1x16xf32> -> vector<1x16xf32>
      %92 = arith.mulf %6, %79 : vector<1x16xf32>
      %93 = arith.addf %91, %92 : vector<1x16xf32>
      %94 = vector.extract_strided_slice %22 {offsets = [4, 0], sizes = [1, 16], strides = [1, 1]} : vector<8x16xf32> to vector<1x16xf32>
      %95 = vector.extract_strided_slice %25 {offsets = [4, 0], sizes = [1, 16], strides = [1, 1]} : vector<8x16xf32> to vector<1x16xf32>
      %96 = vector.extract_strided_slice %28 {offsets = [4, 0], sizes = [1, 64], strides = [1, 1]} : vector<8x64xf32> to vector<1x64xf32>
      %97 = vector.extract_strided_slice %19 {offsets = [0, 4], sizes = [64, 1], strides = [1, 1]} : vector<64x8xf32> to vector<64x1xf32>
      %98 = arith.mulf %94, %95 : vector<1x16xf32>
      %99 = vector.broadcast %94 : vector<1x16xf32> to vector<64x16xf32>
      %100 = arith.mulf %99, %4 : vector<64x16xf32>
      %101 = math.exp %100 : vector<64x16xf32>
      %102 = arith.mulf %101, %90 : vector<64x16xf32>
      %103 = vector.broadcast %97 : vector<64x1xf32> to vector<64x16xf32>
      %104 = vector.broadcast %98 : vector<1x16xf32> to vector<64x16xf32>
      %105 = arith.mulf %103, %104 : vector<64x16xf32>
      %106 = arith.addf %102, %105 : vector<64x16xf32>
      %cst_23 = arith.constant dense<0.000000e+00> : vector<1x16xf32>
      %107 = tpu.matmul %96, %106, %cst_23 {dimension_numbers = #tpu.dot_dimension_numbers<[1], [0], [0], [1], [0, 0, 1, 1], [], []>} : vector<1x64xf32>, vector<64x16xf32>, vector<1x16xf32> -> vector<1x16xf32>
      %108 = arith.mulf %6, %95 : vector<1x16xf32>
      %109 = arith.addf %107, %108 : vector<1x16xf32>
      %110 = vector.extract_strided_slice %22 {offsets = [5, 0], sizes = [1, 16], strides = [1, 1]} : vector<8x16xf32> to vector<1x16xf32>
      %111 = vector.extract_strided_slice %25 {offsets = [5, 0], sizes = [1, 16], strides = [1, 1]} : vector<8x16xf32> to vector<1x16xf32>
      %112 = vector.extract_strided_slice %28 {offsets = [5, 0], sizes = [1, 64], strides = [1, 1]} : vector<8x64xf32> to vector<1x64xf32>
      %113 = vector.extract_strided_slice %19 {offsets = [0, 5], sizes = [64, 1], strides = [1, 1]} : vector<64x8xf32> to vector<64x1xf32>
      %114 = arith.mulf %110, %111 : vector<1x16xf32>
      %115 = vector.broadcast %110 : vector<1x16xf32> to vector<64x16xf32>
      %116 = arith.mulf %115, %4 : vector<64x16xf32>
      %117 = math.exp %116 : vector<64x16xf32>
      %118 = arith.mulf %117, %106 : vector<64x16xf32>
      %119 = vector.broadcast %113 : vector<64x1xf32> to vector<64x16xf32>
      %120 = vector.broadcast %114 : vector<1x16xf32> to vector<64x16xf32>
      %121 = arith.mulf %119, %120 : vector<64x16xf32>
      %122 = arith.addf %118, %121 : vector<64x16xf32>
      %cst_24 = arith.constant dense<0.000000e+00> : vector<1x16xf32>
      %123 = tpu.matmul %112, %122, %cst_24 {dimension_numbers = #tpu.dot_dimension_numbers<[1], [0], [0], [1], [0, 0, 1, 1], [], []>} : vector<1x64xf32>, vector<64x16xf32>, vector<1x16xf32> -> vector<1x16xf32>
      %124 = arith.mulf %6, %111 : vector<1x16xf32>
      %125 = arith.addf %123, %124 : vector<1x16xf32>
      %126 = vector.extract_strided_slice %22 {offsets = [6, 0], sizes = [1, 16], strides = [1, 1]} : vector<8x16xf32> to vector<1x16xf32>
      %127 = vector.extract_strided_slice %25 {offsets = [6, 0], sizes = [1, 16], strides = [1, 1]} : vector<8x16xf32> to vector<1x16xf32>
      %128 = vector.extract_strided_slice %28 {offsets = [6, 0], sizes = [1, 64], strides = [1, 1]} : vector<8x64xf32> to vector<1x64xf32>
      %129 = vector.extract_strided_slice %19 {offsets = [0, 6], sizes = [64, 1], strides = [1, 1]} : vector<64x8xf32> to vector<64x1xf32>
      %130 = arith.mulf %126, %127 : vector<1x16xf32>
      %131 = vector.broadcast %126 : vector<1x16xf32> to vector<64x16xf32>
      %132 = arith.mulf %131, %4 : vector<64x16xf32>
      %133 = math.exp %132 : vector<64x16xf32>
      %134 = arith.mulf %133, %122 : vector<64x16xf32>
      %135 = vector.broadcast %129 : vector<64x1xf32> to vector<64x16xf32>
      %136 = vector.broadcast %130 : vector<1x16xf32> to vector<64x16xf32>
      %137 = arith.mulf %135, %136 : vector<64x16xf32>
      %138 = arith.addf %134, %137 : vector<64x16xf32>
      %cst_25 = arith.constant dense<0.000000e+00> : vector<1x16xf32>
      %139 = tpu.matmul %128, %138, %cst_25 {dimension_numbers = #tpu.dot_dimension_numbers<[1], [0], [0], [1], [0, 0, 1, 1], [], []>} : vector<1x64xf32>, vector<64x16xf32>, vector<1x16xf32> -> vector<1x16xf32>
      %140 = arith.mulf %6, %127 : vector<1x16xf32>
      %141 = arith.addf %139, %140 : vector<1x16xf32>
      %142 = vector.extract_strided_slice %22 {offsets = [7, 0], sizes = [1, 16], strides = [1, 1]} : vector<8x16xf32> to vector<1x16xf32>
      %143 = vector.extract_strided_slice %25 {offsets = [7, 0], sizes = [1, 16], strides = [1, 1]} : vector<8x16xf32> to vector<1x16xf32>
      %144 = vector.extract_strided_slice %28 {offsets = [7, 0], sizes = [1, 64], strides = [1, 1]} : vector<8x64xf32> to vector<1x64xf32>
      %145 = vector.extract_strided_slice %19 {offsets = [0, 7], sizes = [64, 1], strides = [1, 1]} : vector<64x8xf32> to vector<64x1xf32>
      %146 = arith.mulf %142, %143 : vector<1x16xf32>
      %147 = vector.broadcast %142 : vector<1x16xf32> to vector<64x16xf32>
      %148 = arith.mulf %147, %4 : vector<64x16xf32>
      %149 = math.exp %148 : vector<64x16xf32>
      %150 = arith.mulf %149, %138 : vector<64x16xf32>
      %151 = vector.broadcast %145 : vector<64x1xf32> to vector<64x16xf32>
      %152 = vector.broadcast %146 : vector<1x16xf32> to vector<64x16xf32>
      %153 = arith.mulf %151, %152 : vector<64x16xf32>
      %154 = arith.addf %150, %153 : vector<64x16xf32>
      %cst_26 = arith.constant dense<0.000000e+00> : vector<1x16xf32>
      %155 = tpu.matmul %144, %154, %cst_26 {dimension_numbers = #tpu.dot_dimension_numbers<[1], [0], [0], [1], [0, 0, 1, 1], [], []>} : vector<1x64xf32>, vector<64x16xf32>, vector<1x16xf32> -> vector<1x16xf32>
      %156 = arith.mulf %6, %143 : vector<1x16xf32>
      %157 = arith.addf %155, %156 : vector<1x16xf32>
      %158 = tpu.concatenate %45, %61, %77, %93, %109, %125, %141, %157 in 0 : vector<1x16xf32>, vector<1x16xf32>, vector<1x16xf32>, vector<1x16xf32>, vector<1x16xf32>, vector<1x16xf32>, vector<1x16xf32>, vector<1x16xf32> -> vector<8x16xf32>
      %c0_27 = arith.constant 0 : index
      %159 = arith.index_cast %13 : i32 to index
      %c0_28 = arith.constant 0 : index
      %160 = vector.load %arg8[%c0_27, %159, %c0_28] : memref<1x128x16xf32, #tpu.memory_space<vmem>>, vector<1x8x16xf32>
      %161 = vector.shape_cast %160 : vector<1x8x16xf32> to vector<8x16xf32>
      %162 = vector.shape_cast %158 : vector<8x16xf32> to vector<1x8x16xf32>
      tpu.vector_store %arg8[%c0_27, %159, %c0_28], %162 {strides = array<i32>} : memref<1x128x16xf32, #tpu.memory_space<vmem>>, vector<1x8x16xf32>,
      %c0_29 = arith.constant 0 : index
      %c0_30 = arith.constant 0 : index
      %163 = vector.load %arg9[%c0_29, %c0_30] : memref<64x16xf32, #tpu.memory_space<vmem>>, vector<64x16xf32>
      tpu.vector_store %arg9[%c0_29, %c0_30], %154 {strides = array<i32>} : memref<64x16xf32, #tpu.memory_space<vmem>>, vector<64x16xf32>,
    }
    %c16_i32_10 = arith.constant 16 : i32
    return
  }
  func.func @transform_0(%arg0: i32, %arg1: i32) -> (i32, i32, i32) {
    %c0_i32 = arith.constant 0 : i32
    %c0_i32_0 = arith.constant 0 : i32
    return %arg0, %arg1, %c0_i32 : i32, i32, i32
  }
  func.func @transform_1(%arg0: i32, %arg1: i32) -> (i32, i32, i32) {
    %c0_i32 = arith.constant 0 : i32
    %c0_i32_0 = arith.constant 0 : i32
    return %arg0, %arg1, %c0_i32 : i32, i32, i32
  }
  func.func @transform_2(%arg0: i32, %arg1: i32) -> (i32, i32, i32) {
    %c0_i32 = arith.constant 0 : i32
    %c0_i32_0 = arith.constant 0 : i32
    return %arg0, %c0_i32, %arg1 : i32, i32, i32
  }
  func.func @transform_3(%arg0: i32, %arg1: i32) -> (i32, i32, i32) {
    %c0_i32 = arith.constant 0 : i32
    %c0_i32_0 = arith.constant 0 : i32
    return %arg0, %arg1, %c0_i32 : i32, i32, i32
  }
  func.func @transform_4(%arg0: i32, %arg1: i32) -> (i32, i32, i32) {
    %c0_i32 = arith.constant 0 : i32
    %c0_i32_0 = arith.constant 0 : i32
    %c0_i32_1 = arith.constant 0 : i32
    return %arg0, %c0_i32, %c0_i32_0 : i32, i32, i32
  }
  func.func @transform_5(%arg0: i32, %arg1: i32) -> (i32, i32, i32) {
    %c0_i32 = arith.constant 0 : i32
    %c0_i32_0 = arith.constant 0 : i32
    %c0_i32_1 = arith.constant 0 : i32
    return %arg0, %c0_i32, %c0_i32_0 : i32, i32, i32
  }
  func.func @transform_6(%arg0: i32, %arg1: i32) -> (i32, i32, i32) {
    %c0_i32 = arith.constant 0 : i32
    %c0_i32_0 = arith.constant 0 : i32
    return %arg0, %arg1, %c0_i32 : i32, i32, i32
  }
}

</mosaic_0001>

<llo_original>
// kernel: tpu_custom_call.1
$region0: #{tpu_custom_call.1}
  #allocation0 [shape = 'u32[]', space=smem, size = 0x4, offset = 0x4, fixed_abs, tag = 'smem constant byte address 0x4 - core index']
  #allocation1 [shape = 'u32[72,128]{1,0:T(1,128)}', space=vmem, size = 0x9000, scoped, tag = 'internal scratch']
  #allocation2 [shape = 'f32[64,16]{1,0:T(8,128)}', space=vmem, size = 0x8000, scoped, tag = 'scratch operand']
  %s0 = inlined_call_operand.vmem [shape: f32[4,256,16], index: 0, kind: input, shape index: {}]
  %s1 = inlined_call_operand.vmem [shape: f32[4,256,16], index: 1, kind: input, shape index: {}]
  %s2 = inlined_call_operand.vmem [shape: f32[4,64,256], index: 2, kind: input, shape index: {}]
  %s3 = inlined_call_operand.vmem [shape: f32[4,256,64], index: 3, kind: input, shape index: {}]
  %s4 = inlined_call_operand.vmem [shape: f32[4,64,16], index: 4, kind: input, shape index: {}]
  %s5 = inlined_call_operand.vmem [shape: f32[4,1,16], index: 5, kind: input, shape index: {}]
  %s6 = inlined_call_operand.vmem [shape: f32[4,256,16], index: 6, kind: output, shape index: {}]
  %s7 = sld [smem:[#allocation0]]
  $region106: #{tpu_custom_call.1} parent=0
    _
  %s9 = ssub.s32 1, %s7
  %s10 = scalar_select 0, %s9, %s7
  $region1: #{tpu_custom_call.1} parent=0
    #allocation3 [shape = 'u8[65536]{0}', space=vmem, size = 0x10000, scoped, tag = 'input window, operand 2']
    loop: start=0, step=1, limit=10
    $region2: #{tpu_custom_call.1} parent=1 // loop_pre_header
      _
    $region3: #{tpu_custom_call.1} parent=1 // loop_header
      %s12 = sphi 0, %s16
      %p13 = scmp.ge.s32.totalorder %s12, 10
      %s19 = sphi 0, %s31
      %s20 = sphi 0, %s27
      %s21 = sphi 0, %s19
      %s22 = sphi 0, %s20
      %s23 = sphi 0, %s21
      %s24 = sphi 0, %s22
      %s36 = sphi 0, %s38
      %s39 = sphi 0, %s36
      %s40 = sphi 0, %s39
      %s56 = sphi 0, %s40
      %s64 = sphi 0, %s66
      %s67 = sphi 0, %s64
      %s68 = sphi 0, %s67
      %s84 = sphi 0, %s68
      %s92 = sphi 0, %s94
      %s95 = sphi 0, %s92
      %s96 = sphi 0, %s95
      %s112 = sphi 0, %s96
      %s120 = sphi 0, %s122
      %s123 = sphi 0, %s120
      %s124 = sphi 0, %s123
      %s140 = sphi 0, %s124
      %s146 = sphi 0, %s148
      %s149 = sphi 0, %s146
      %s150 = sphi 0, %s149
      %s166 = sphi 0, %s150
      %s172 = sphi 0, %s174
      %s175 = sphi 0, %s172
      %s176 = sphi 0, %s175
      %s192 = sphi 0, %s176
      %s200 = sphi 0, %s202
      %s203 = sphi 0, %s200
      %s204 = sphi 0, %s203
      %s220 = sphi 0, %s204
    $region4: #{tpu_custom_call.1} parent=1 // loop_header_branch
      %15 = sbr.rel (%p13) target = $region8
    $region5: #{tpu_custom_call.1} parent=1 // loop_body
      %s17 = ssub.s32 %s12, 1
      %s18 = ssub.s32 %s12, 2
      %s25 = sadd.s32 1, %s20
      %p26 = scmp.ge.s32.totalorder %s25, 2
      %s27 = scalar_select %p26, 0, %s25
      %s28 = sadd.s32 1, %s19
      %s29 = scalar_select %p26, %s28, %s19
      %p30 = scmp.ge.s32.totalorder %s29, 4
      %s31 = scalar_select %p30, 0, %s29
      %s32 = ssub.s32 %s19, %s31
      %s33 = ssub.s32 %s20, %s27
      %s34 = sor.u32 %s32, %s33
      %p35 = scmp.eq.s32.totalorder %s34, 0
      %s37 = sadd.s32 %s36, 1
      %s38 = scalar_select %p35, %s36, %s37
      %p41 = pneg %p35
      %p42 = scmp.eq.s32.totalorder %s12, 7
      %p43 = por %p41, %p42
      %p44 = scmp.ne.s32.totalorder %s36, %s39
      %p45 = scmp.eq.s32.totalorder %s12, 0
      %p46 = por %p44, %p45
      %p47 = scmp.ne.s32.totalorder %s36, %s39
      %p48 = scmp.eq.s32.totalorder %s17, 7
      %p49 = por %p47, %p48
      %p50 = scmp.ne.s32.totalorder %s39, %s40
      %p51 = scmp.eq.s32.totalorder %s17, 0
      %p52 = por %p50, %p51
      %p53 = scmp.ne.s32.totalorder %s39, %s40
      %p54 = scmp.eq.s32.totalorder %s18, 7
      %p55 = por %p53, %p54
      %p57 = scmp.ne.s32.totalorder %s40, %s56
      %p58 = scmp.eq.s32.totalorder %s18, 0
      %p59 = por %p57, %p58
      %s60 = ssub.s32 %s19, %s31
      %s61 = ssub.s32 %s20, %s27
      %s62 = sor.u32 %s60, %s61
      %p63 = scmp.eq.s32.totalorder %s62, 0
      %s65 = sadd.s32 %s64, 1
      %s66 = scalar_select %p63, %s64, %s65
      %p69 = pneg %p63
      %p70 = scmp.eq.s32.totalorder %s12, 7
      %p71 = por %p69, %p70
      %p72 = scmp.ne.s32.totalorder %s64, %s67
      %p73 = scmp.eq.s32.totalorder %s12, 0
      %p74 = por %p72, %p73
      %p75 = scmp.ne.s32.totalorder %s64, %s67
      %p76 = scmp.eq.s32.totalorder %s17, 7
      %p77 = por %p75, %p76
      %p78 = scmp.ne.s32.totalorder %s67, %s68
      %p79 = scmp.eq.s32.totalorder %s17, 0
      %p80 = por %p78, %p79
      %p81 = scmp.ne.s32.totalorder %s67, %s68
      %p82 = scmp.eq.s32.totalorder %s18, 7
      %p83 = por %p81, %p82
      %p85 = scmp.ne.s32.totalorder %s68, %s84
      %p86 = scmp.eq.s32.totalorder %s18, 0
      %p87 = por %p85, %p86
      %s88 = ssub.s32 %s19, %s31
      %s89 = ssub.s32 %s20, %s27
      %s90 = sor.u32 %s88, %s89
      %p91 = scmp.eq.s32.totalorder %s90, 0
      %s93 = sadd.s32 %s92, 1
      %s94 = scalar_select %p91, %s92, %s93
      %p97 = pneg %p91
      %p98 = scmp.eq.s32.totalorder %s12, 7
      %p99 = por %p97, %p98
      %p100 = scmp.ne.s32.totalorder %s92, %s95
      %p101 = scmp.eq.s32.totalorder %s12, 0
      %p102 = por %p100, %p101
      %p103 = scmp.ne.s32.totalorder %s92, %s95
      %p104 = scmp.eq.s32.totalorder %s17, 7
      %p105 = por %p103, %p104
      %p106 = scmp.ne.s32.totalorder %s95, %s96
      %p107 = scmp.eq.s32.totalorder %s17, 0
      %p108 = por %p106, %p107
      %p109 = scmp.ne.s32.totalorder %s95, %s96
      %p110 = scmp.eq.s32.totalorder %s18, 7
      %p111 = por %p109, %p110
      %p113 = scmp.ne.s32.totalorder %s96, %s112
      %p114 = scmp.eq.s32.totalorder %s18, 0
      %p115 = por %p113, %p114
      %s116 = ssub.s32 %s19, %s31
      %s117 = ssub.s32 %s20, %s27
      %s118 = sor.u32 %s116, %s117
      %p119 = scmp.eq.s32.totalorder %s118, 0
      %s121 = sadd.s32 %s120, 1
      %s122 = scalar_select %p119, %s120, %s121
      %p125 = pneg %p119
      %p126 = scmp.eq.s32.totalorder %s12, 7
      %p127 = por %p125, %p126
      %p128 = scmp.ne.s32.totalorder %s120, %s123
      %p129 = scmp.eq.s32.totalorder %s12, 0
      %p130 = por %p128, %p129
      %p131 = scmp.ne.s32.totalorder %s120, %s123
      %p132 = scmp.eq.s32.totalorder %s17, 7
      %p133 = por %p131, %p132
      %p134 = scmp.ne.s32.totalorder %s123, %s124
      %p135 = scmp.eq.s32.totalorder %s17, 0
      %p136 = por %p134, %p135
      %p137 = scmp.ne.s32.totalorder %s123, %s124
      %p138 = scmp.eq.s32.totalorder %s18, 7
      %p139 = por %p137, %p138
      %p141 = scmp.ne.s32.totalorder %s124, %s140
      %p142 = scmp.eq.s32.totalorder %s18, 0
      %p143 = por %p141, %p142
      %s144 = ssub.s32 %s19, %s31
      %p145 = scmp.eq.s32.totalorder %s144, 0
      %s147 = sadd.s32 %s146, 1
      %s148 = scalar_select %p145, %s146, %s147
      %p151 = pneg %p145
      %p152 = scmp.eq.s32.totalorder %s12, 7
      %p153 = por %p151, %p152
      %p154 = scmp.ne.s32.totalorder %s146, %s149
      %p155 = scmp.eq.s32.totalorder %s12, 0
      %p156 = por %p154, %p155
      %p157 = scmp.ne.s32.totalorder %s146, %s149
      %p158 = scmp.eq.s32.totalorder %s17, 7
      %p159 = por %p157, %p158
      %p160 = scmp.ne.s32.totalorder %s149, %s150
      %p161 = scmp.eq.s32.totalorder %s17, 0
      %p162 = por %p160, %p161
      %p163 = scmp.ne.s32.totalorder %s149, %s150
      %p164 = scmp.eq.s32.totalorder %s18, 7
      %p165 = por %p163, %p164
      %p167 = scmp.ne.s32.totalorder %s150, %s166
      %p168 = scmp.eq.s32.totalorder %s18, 0
      %p169 = por %p167, %p168
      %s170 = ssub.s32 %s19, %s31
      %p171 = scmp.eq.s32.totalorder %s170, 0
      %s173 = sadd.s32 %s172, 1
      %s174 = scalar_select %p171, %s172, %s173
      %p177 = pneg %p171
      %p178 = scmp.eq.s32.totalorder %s12, 7
      %p179 = por %p177, %p178
      %p180 = scmp.ne.s32.totalorder %s172, %s175
      %p181 = scmp.eq.s32.totalorder %s12, 0
      %p182 = por %p180, %p181
      %p183 = scmp.ne.s32.totalorder %s172, %s175
      %p184 = scmp.eq.s32.totalorder %s17, 7
      %p185 = por %p183, %p184
      %p186 = scmp.ne.s32.totalorder %s175, %s176
      %p187 = scmp.eq.s32.totalorder %s17, 0
      %p188 = por %p186, %p187
      %p189 = scmp.ne.s32.totalorder %s175, %s176
      %p190 = scmp.eq.s32.totalorder %s18, 7
      %p191 = por %p189, %p190
      %p193 = scmp.ne.s32.totalorder %s176, %s192
      %p194 = scmp.eq.s32.totalorder %s18, 0
      %p195 = por %p193, %p194
      %s196 = ssub.s32 %s19, %s31
      %s197 = ssub.s32 %s20, %s27
      %s198 = sor.u32 %s196, %s197
      %p199 = scmp.eq.s32.totalorder %s198, 0
      %s201 = sadd.s32 %s200, 1
      %s202 = scalar_select %p199, %s200, %s201
      %p205 = pneg %p199
      %p206 = scmp.eq.s32.totalorder %s12, 7
      %p207 = por %p205, %p206
      %p208 = scmp.ne.s32.totalorder %s200, %s203
      %p209 = scmp.eq.s32.totalorder %s12, 0
      %p210 = por %p208, %p209
      %p211 = scmp.ne.s32.totalorder %s200, %s203
      %p212 = scmp.eq.s32.totalorder %s17, 7
      %p213 = por %p211, %p212
      %p214 = scmp.ne.s32.totalorder %s203, %s204
      %p215 = scmp.eq.s32.totalorder %s17, 0
      %p216 = por %p214, %p215
      %p217 = scmp.ne.s32.totalorder %s203, %s204
      %p218 = scmp.eq.s32.totalorder %s18, 7
      %p219 = por %p217, %p218
      %p221 = scmp.ne.s32.totalorder %s204, %s220
      %p222 = scmp.eq.s32.totalorder %s18, 0
      %p223 = por %p221, %p222
      %p224 = scmp.le.s32.totalorder 1, %s12
      %p225 = scmp.lt.s32.totalorder %s12, 9
      %p226 = pnand %p224, %p225
      %p227 = pneg %p226
      // Predicated region
      $region9: #{tpu_custom_call.1} parent=5 // pred_check
        _
      $region10: #{tpu_custom_call.1} parent=5 // pred_check_branch
        %229 = sbr.rel (%p226) target = $region12
      $region11: #{tpu_custom_call.1} parent=5 // pred_region
        %s230 = ssub.s32 %s12, 1
      $region12: #{tpu_custom_call.1} parent=5 // pred_fallthru
        _
      %p231 = scmp.lt.s32.totalorder %s12, 8
      // Predicated region
      $region13: #{tpu_custom_call.1} parent=5 // pred_check
        %p232 = pneg %p231
      $region14: #{tpu_custom_call.1} parent=5 // pred_check_branch
        %234 = sbr.rel (%p232) target = $region16
      $region15: #{tpu_custom_call.1} parent=5 // pred_region
        // Predicated region
        $region17: #{tpu_custom_call.1} parent=15 // pred_check
          %p235 = pneg %p46
        $region18: #{tpu_custom_call.1} parent=15 // pred_check_branch
          %237 = sbr.rel (%p235) target = $region20
        $region19: #{tpu_custom_call.1} parent=15 // pred_region
          %s238 = smul.u32 16, %s20
          %p239 = scmp.lt.s32.totalorder %s19, 3
          %s240 = scalar_select %p239, %s19, 3
          %p241 = scmp.lt.s32.totalorder %s238, 31
          %s242 = scalar_select %p241, %s238, 31
          %s243 = smul.addr %s240, 32
          %s244 = sadd.s32 %s242, %s243
          %s245 = smul.addr %s244, 8
          %s246 = scalar_lea.vmem %s0, %s245
          %s247 = smul.u32 16, %s20
        $region20: #{tpu_custom_call.1} parent=15 // pred_fallthru
          _
        // Predicated region
        $region21: #{tpu_custom_call.1} parent=15 // pred_check
          %p248 = pneg %p74
        $region22: #{tpu_custom_call.1} parent=15 // pred_check_branch
          %250 = sbr.rel (%p248) target = $region24
        $region23: #{tpu_custom_call.1} parent=15 // pred_region
          %s251 = smul.u32 16, %s20
          %p252 = scmp.lt.s32.totalorder %s19, 3
          %s253 = scalar_select %p252, %s19, 3
          %p254 = scmp.lt.s32.totalorder %s251, 31
          %s255 = scalar_select %p254, %s251, 31
          %s256 = smul.addr %s253, 32
          %s257 = sadd.s32 %s255, %s256
          %s258 = smul.addr %s257, 8
          %s259 = scalar_lea.vmem %s1, %s258
          %s260 = smul.u32 16, %s20
        $region24: #{tpu_custom_call.1} parent=15 // pred_fallthru
          _
        // Predicated region
        $region25: #{tpu_custom_call.1} parent=15 // pred_check
          %p261 = pneg %p102
        $region26: #{tpu_custom_call.1} parent=15 // pred_check_branch
          %263 = sbr.rel (%p261) target = $region28
        $region27: #{tpu_custom_call.1} parent=15 // pred_region
          %s264 = sand.u32 %s92, 1
          %s265 = sand.u32 %s92, 1
          %s266 = smul.addr %s265, 64
          %s267 = scalar_lea.vmem [#allocation3], %s266
          %s268 = smul.addr %s19, 16
          %s269 = sadd.s32 %s20, %s268
          %s270 = smul.addr %s269, 8
          %s271 = scalar_lea.vmem %s2, %s270
          // Predicated region
          $region29: #{tpu_custom_call.1} parent=27 // pred_check
            _
          $region30: #{tpu_custom_call.1} parent=27 // pred_check_branch
            %273 = sbr.rel (0) target = $region32
          $region31: #{tpu_custom_call.1} parent=27 // pred_region
            // Predicated region
            $region33: #{tpu_custom_call.1} parent=31 // pred_check
              _
            $region34: #{tpu_custom_call.1} parent=31 // pred_check_branch
              %275 = sbr.rel (0) target = $region36
            $region35: #{tpu_custom_call.1} parent=31 // pred_region
              // Predicated region
              $region48: #{tpu_custom_call.1} parent=35 // pred_check
                _
              $region49: #{tpu_custom_call.1} parent=35 // pred_check_branch
                %305 = sbr.rel (0) target = $region51
              $region50: #{tpu_custom_call.1} parent=35 // pred_region
                loop: start=0, step=1, limit=1
                $region52: #{tpu_custom_call.1} parent=50 // loop_pre_header
                  _
                $region53: #{tpu_custom_call.1} parent=50 // loop_header
                  %s307 = sphi 0, %s311
                  %p308 = scmp.ge.s32.totalorder %s307, 1
                  %s312 = sphi %s271, %s271
                  %s313 = sphi %s267, %s267
                $region54: #{tpu_custom_call.1} parent=50 // loop_header_branch
                  %310 = sbr.rel (%p308) target = $region58
                $region55: #{tpu_custom_call.1} parent=50 // loop_body
                  %v314 = vld [vmem:[%s312] sm:$0xff]
                  %315 = vst [vmem:[%s313] sm:$0xff] %v314
                  %v316 = vld [vmem:[%s312 + $0x10] sm:$0xff]
                  %317 = vst [vmem:[%s313 + $0x8] sm:$0xff] %v316
                  %v318 = vld [vmem:[%s312 + $0x20] sm:$0xff]
                  %319 = vst [vmem:[%s313 + $0x10] sm:$0xff] %v318
                  %v320 = vld [vmem:[%s312 + $0x30] sm:$0xff]
                  %321 = vst [vmem:[%s313 + $0x18] sm:$0xff] %v320
                  %v322 = vld [vmem:[%s312 + $0x40] sm:$0xff]
                  %323 = vst [vmem:[%s313 + $0x20] sm:$0xff] %v322
                  %v324 = vld [vmem:[%s312 + $0x50] sm:$0xff]
                  %325 = vst [vmem:[%s313 + $0x28] sm:$0xff] %v324
                  %v326 = vld [vmem:[%s312 + $0x60] sm:$0xff]
                  %327 = vst [vmem:[%s313 + $0x30] sm:$0xff] %v326
                  %v328 = vld [vmem:[%s312 + $0x70] sm:$0xff]
                  %329 = vst [vmem:[%s313 + $0x38] sm:$0xff] %v328
                $region56: #{tpu_custom_call.1} parent=50 // loop_footer
                  %s311 = sadd.s32 1, %s307
                $region57: #{tpu_custom_call.1} parent=50 // loop_footer_branch
                  %306 = sbr.rel target = $region53
                $region58: #{tpu_custom_call.1} parent=50 // loop_exit
                  _
              $region51: #{tpu_custom_call.1} parent=35 // pred_fallthru
                _
              // Predicated region
              $region59: #{tpu_custom_call.1} parent=35 // pred_check
                _
              $region60: #{tpu_custom_call.1} parent=35 // pred_check_branch
                %331 = sbr.rel target = $region62
              $region61: #{tpu_custom_call.1} parent=35 // pred_region
                _
              $region62: #{tpu_custom_call.1} parent=35 // pred_fallthru
                _
            $region36: #{tpu_custom_call.1} parent=31 // pred_fallthru
              _
            // Predicated region
            $region37: #{tpu_custom_call.1} parent=31 // pred_check
              _
            $region38: #{tpu_custom_call.1} parent=31 // pred_check_branch
              %277 = sbr.rel target = $region40
            $region39: #{tpu_custom_call.1} parent=31 // pred_region
              %s279 = ssub.s32 256, 1
              loop: start=0, step=1, limit=1
              $region41: #{tpu_custom_call.1} parent=39 // loop_pre_header
                _
              $region42: #{tpu_custom_call.1} parent=39 // loop_header
                %s281 = sphi 0, %s285
                %p282 = scmp.ge.s32.totalorder %s281, 1
                %s286 = sphi %s271, %s271
                %s287 = sphi %s267, %s267
              $region43: #{tpu_custom_call.1} parent=39 // loop_header_branch
                %284 = sbr.rel (%p282) target = $region47
              $region44: #{tpu_custom_call.1} parent=39 // loop_body
                %v288 = vld [vmem:[%s286] sm:%s279]
                %289 = vst [vmem:[%s287] sm:%s279] %v288
                %v290 = vld [vmem:[%s286 + $0x10] sm:%s279]
                %291 = vst [vmem:[%s287 + $0x8] sm:%s279] %v290
                %v292 = vld [vmem:[%s286 + $0x20] sm:%s279]
                %293 = vst [vmem:[%s287 + $0x10] sm:%s279] %v292
                %v294 = vld [vmem:[%s286 + $0x30] sm:%s279]
                %295 = vst [vmem:[%s287 + $0x18] sm:%s279] %v294
                %v296 = vld [vmem:[%s286 + $0x40] sm:%s279]
                %297 = vst [vmem:[%s287 + $0x20] sm:%s279] %v296
                %v298 = vld [vmem:[%s286 + $0x50] sm:%s279]
                %299 = vst [vmem:[%s287 + $0x28] sm:%s279] %v298
                %v300 = vld [vmem:[%s286 + $0x60] sm:%s279]
                %301 = vst [vmem:[%s287 + $0x30] sm:%s279] %v300
                %v302 = vld [vmem:[%s286 + $0x70] sm:%s279]
                %303 = vst [vmem:[%s287 + $0x38] sm:%s279] %v302
              $region45: #{tpu_custom_call.1} parent=39 // loop_footer
                %s285 = sadd.s32 1, %s281
              $region46: #{tpu_custom_call.1} parent=39 // loop_footer_branch
                %280 = sbr.rel target = $region42
              $region47: #{tpu_custom_call.1} parent=39 // loop_exit
                _
            $region40: #{tpu_custom_call.1} parent=31 // pred_fallthru
              _
          $region32: #{tpu_custom_call.1} parent=27 // pred_fallthru
            _
          %332 = vnop
        $region28: #{tpu_custom_call.1} parent=15 // pred_fallthru
          _
        // Predicated region
        $region63: #{tpu_custom_call.1} parent=15 // pred_check
          %p333 = pneg %p130
        $region64: #{tpu_custom_call.1} parent=15 // pred_check_branch
          %335 = sbr.rel (%p333) target = $region66
        $region65: #{tpu_custom_call.1} parent=15 // pred_region
          %s336 = smul.u32 16, %s20
          %p337 = scmp.lt.s32.totalorder %s19, 3
          %s338 = scalar_select %p337, %s19, 3
          %p339 = scmp.lt.s32.totalorder %s336, 31
          %s340 = scalar_select %p339, %s336, 31
          %s341 = smul.addr %s338, 32
          %s342 = sadd.s32 %s340, %s341
          %s343 = smul.addr %s342, 8
          %s344 = scalar_lea.vmem %s3, %s343
          %s345 = smul.u32 16, %s20
        $region66: #{tpu_custom_call.1} parent=15 // pred_fallthru
          _
        // Predicated region
        $region67: #{tpu_custom_call.1} parent=15 // pred_check
          %p346 = pneg %p156
        $region68: #{tpu_custom_call.1} parent=15 // pred_check_branch
          %348 = sbr.rel (%p346) target = $region70
        $region69: #{tpu_custom_call.1} parent=15 // pred_region
          %p349 = scmp.lt.s32.totalorder %s19, 3
          %s350 = scalar_select %p349, %s19, 3
          %s351 = smul.addr %s350, 8
          %s352 = smul.addr %s351, 8
          %s353 = scalar_lea.vmem %s4, %s352
        $region70: #{tpu_custom_call.1} parent=15 // pred_fallthru
          _
        // Predicated region
        $region71: #{tpu_custom_call.1} parent=15 // pred_check
          %p354 = pneg %p182
        $region72: #{tpu_custom_call.1} parent=15 // pred_check_branch
          %356 = sbr.rel (%p354) target = $region74
        $region73: #{tpu_custom_call.1} parent=15 // pred_region
          %p357 = scmp.lt.s32.totalorder %s19, 3
          %s358 = scalar_select %p357, %s19, 3
          %s359 = scalar_lea.vmem %s5, %s358
        $region74: #{tpu_custom_call.1} parent=15 // pred_fallthru
          _
      $region16: #{tpu_custom_call.1} parent=5 // pred_fallthru
        _
      %p360 = scmp.le.s32.totalorder 1, %s12
      %p361 = scmp.lt.s32.totalorder %s12, 9
      %p362 = pnand %p360, %p361
      %p363 = pneg %p362
      // Predicated region
      $region75: #{tpu_custom_call.1} parent=5 // pred_check
        _
      $region76: #{tpu_custom_call.1} parent=5 // pred_check_branch
        %365 = sbr.rel (%p362) target = $region78
      $region77: #{tpu_custom_call.1} parent=5 // pred_region
        %s366 = ssub.s32 %s12, 1
        %s367 = sand.u32 %s95, 1
        %s368 = sand.u32 %s95, 1
        %s369 = smul.addr %s368, 64
        %s370 = scalar_lea.vmem [#allocation3], %s369
        // Predicated region
        $region79: #{tpu_custom_call.1} parent=77 // pred_check
          %p371 = pneg %p108
        $region80: #{tpu_custom_call.1} parent=77 // pred_check_branch
          %373 = sbr.rel (%p371) target = $region82
        $region81: #{tpu_custom_call.1} parent=77 // pred_region
          _
        $region82: #{tpu_custom_call.1} parent=77 // pred_fallthru
          _
        %s374 = smul.u32 16, %s22
        %p375 = scmp.lt.s32.totalorder %s21, 3
        %s376 = scalar_select %p375, %s21, 3
        %p377 = scmp.lt.s32.totalorder %s374, 31
        %s378 = scalar_select %p377, %s374, 31
        %s379 = smul.addr %s376, 32
        %s380 = sadd.s32 %s378, %s379
        %s381 = smul.addr %s380, 8
        %s382 = scalar_lea.vmem %s0, %s381
        %p383 = pneg %p52
        %p384 = pneg %p49
        %s385 = smul.u32 16, %s22
        %p386 = scmp.lt.s32.totalorder %s21, 3
        %s387 = scalar_select %p386, %s21, 3
        %p388 = scmp.lt.s32.totalorder %s385, 31
        %s389 = scalar_select %p388, %s385, 31
        %s390 = smul.addr %s387, 32
        %s391 = sadd.s32 %s389, %s390
        %s392 = smul.addr %s391, 8
        %s393 = scalar_lea.vmem %s1, %s392
        %p394 = pneg %p80
        %p395 = pneg %p77
        %s396 = sand.u32 %s95, 1
        %s397 = sand.u32 %s95, 1
        %s398 = smul.addr %s397, 64
        %s399 = scalar_lea.vmem [#allocation3], %s398
        %p400 = pneg %p108
        %p401 = pneg %p105
        %s402 = smul.u32 16, %s22
        %p403 = scmp.lt.s32.totalorder %s21, 3
        %s404 = scalar_select %p403, %s21, 3
        %p405 = scmp.lt.s32.totalorder %s402, 31
        %s406 = scalar_select %p405, %s402, 31
        %s407 = smul.addr %s404, 32
        %s408 = sadd.s32 %s406, %s407
        %s409 = smul.addr %s408, 8
        %s410 = scalar_lea.vmem %s3, %s409
        %p411 = pneg %p136
        %p412 = pneg %p133
        %p413 = scmp.lt.s32.totalorder %s21, 3
        %s414 = scalar_select %p413, %s21, 3
        %s415 = smul.addr %s414, 8
        %s416 = smul.addr %s415, 8
        %s417 = scalar_lea.vmem %s4, %s416
        %p418 = pneg %p162
        %p419 = pneg %p159
        %p420 = scmp.lt.s32.totalorder %s21, 3
        %s421 = scalar_select %p420, %s21, 3
        %s422 = scalar_lea.vmem %s5, %s421
        %p423 = pneg %p188
        %p424 = pneg %p185
        %p425 = pneg %p216
        %p426 = pneg %p213
        %s427 = smul.u32 16, %s22
        %p428 = scmp.lt.s32.totalorder %s21, 3
        %s429 = scalar_select %p428, %s21, 3
        %p430 = scmp.lt.s32.totalorder %s427, 31
        %s431 = scalar_select %p430, %s427, 31
        %s432 = smul.addr %s429, 32
        %s433 = sadd.s32 %s431, %s432
        %s434 = smul.addr %s433, 8
        %s435 = scalar_lea.vmem %s6, %s434
        %s436 = smul.u32 16, %s22
        %p437 = scmp.lt.s32.totalorder %s21, 3
        %s438 = scalar_select %p437, %s21, 3
        %p439 = scmp.lt.s32.totalorder %s436, 31
        %s440 = scalar_select %p439, %s436, 31
        %s441 = smul.addr %s438, 32
        %s442 = sadd.s32 %s440, %s441
        %s443 = smul.addr %s442, 8
        %s444 = scalar_lea.vmem %s0, %s443
        %s445 = smul.u32 16, %s22
        %s446 = smul.u32 16, %s22
        %p447 = scmp.lt.s32.totalorder %s21, 3
        %s448 = scalar_select %p447, %s21, 3
        %p449 = scmp.lt.s32.totalorder %s446, 31
        %s450 = scalar_select %p449, %s446, 31
        %s451 = smul.addr %s448, 32
        %s452 = sadd.s32 %s450, %s451
        %s453 = smul.addr %s452, 8
        %s454 = scalar_lea.vmem %s1, %s453
        %s455 = smul.u32 16, %s22
        %s456 = smul.u32 16, %s22
        %p457 = scmp.lt.s32.totalorder %s21, 3
        %s458 = scalar_select %p457, %s21, 3
        %p459 = scmp.lt.s32.totalorder %s456, 31
        %s460 = scalar_select %p459, %s456, 31
        %s461 = smul.addr %s458, 32
        %s462 = sadd.s32 %s460, %s461
        %s463 = smul.addr %s462, 8
        %s464 = scalar_lea.vmem %s3, %s463
        %s465 = smul.u32 16, %s22
        %p466 = scmp.lt.s32.totalorder %s21, 3
        %s467 = scalar_select %p466, %s21, 3
        %s468 = smul.addr %s467, 8
        %s469 = smul.addr %s468, 8
        %s470 = scalar_lea.vmem %s4, %s469
        %p471 = scmp.lt.s32.totalorder %s21, 3
        %s472 = scalar_select %p471, %s21, 3
        %s473 = scalar_lea.vmem %s5, %s472
        %s474 = smul.u32 16, %s22
        %p475 = scmp.lt.s32.totalorder %s21, 3
        %s476 = scalar_select %p475, %s21, 3
        %p477 = scmp.lt.s32.totalorder %s474, 31
        %s478 = scalar_select %p477, %s474, 31
        %s479 = smul.addr %s476, 32
        %s480 = sadd.s32 %s478, %s479
        %s481 = smul.addr %s480, 8
        %s482 = scalar_lea.vmem %s6, %s481
        %s483 = smul.u32 16, %s22
        %p484 = scmp.eq.s32.totalorder %s22, 0
        // Predicated region
        $region83: #{tpu_custom_call.1} parent=77 // pred_check
          %p485 = pneg %p484
        $region84: #{tpu_custom_call.1} parent=77 // pred_check_branch
          %487 = sbr.rel (%p485) target = $region86
        $region85: #{tpu_custom_call.1} parent=77 // pred_region
          %vm488 = vcmask 130048
          %489 = vst.msk [vmem:[#allocation2] sm:$0xff] %vm488, 0.0
          %490 = vst.msk [vmem:[#allocation2 + $0x8] sm:$0xff] %vm488, 0.0
          %491 = vst.msk [vmem:[#allocation2 + $0x10] sm:$0xff] %vm488, 0.0
          %492 = vst.msk [vmem:[#allocation2 + $0x18] sm:$0xff] %vm488, 0.0
          %493 = vst.msk [vmem:[#allocation2 + $0x20] sm:$0xff] %vm488, 0.0
          %494 = vst.msk [vmem:[#allocation2 + $0x28] sm:$0xff] %vm488, 0.0
          %495 = vst.msk [vmem:[#allocation2 + $0x30] sm:$0xff] %vm488, 0.0
          %496 = vst.msk [vmem:[#allocation2 + $0x38] sm:$0xff] %vm488, 0.0
        $region86: #{tpu_custom_call.1} parent=77 // pred_fallthru
          _
        %v497 = vld [vmem:[%s470] sm:$0xff]
        %v498 = vld [vmem:[%s470 + $0x8] sm:$0xff]
        %v499 = vld [vmem:[%s470 + $0x10] sm:$0xff]
        %v500 = vld [vmem:[%s470 + $0x18] sm:$0xff]
        %v501 = vld [vmem:[%s470 + $0x20] sm:$0xff]
        %v502 = vld [vmem:[%s470 + $0x28] sm:$0xff]
        %v503 = vld [vmem:[%s470 + $0x30] sm:$0xff]
        %v504 = vld [vmem:[%s470 + $0x38] sm:$0xff]
        %v505 = vld [vmem:[%s473] sm:$0x1]
        %v506 = vld [vmem:[%s370] sm:$0xff]
        %v507 = vld [vmem:[%s370 + $0x8] sm:$0xff]
        %v508 = vld [vmem:[%s370 + $0x10] sm:$0xff]
        %v509 = vld [vmem:[%s370 + $0x18] sm:$0xff]
        %v510 = vld [vmem:[%s370 + $0x20] sm:$0xff]
        %v511 = vld [vmem:[%s370 + $0x28] sm:$0xff]
        %v512 = vld [vmem:[%s370 + $0x30] sm:$0xff]
        %v513 = vld [vmem:[%s370 + $0x38] sm:$0xff]
        %v514 = vlaneseq
        %v515 = vshrl.u32 %v514, 7
        %v516 = vadd.s32 %v515, 8
        %v517 = vadd.s32 %v515, 16
        %v518 = vadd.s32 %v515, 24
        %v519 = vadd.s32 %v515, 32
        %v520 = vadd.s32 %v515, 40
        %v521 = vadd.s32 %v515, 48
        %v522 = vadd.s32 %v515, 56
        %v523 = vadd.s32 %v515, 64
        %v524 = vadd.s32 %v515, 72
        %v525 = vadd.s32 %v515, 80
        %v526 = vadd.s32 %v515, 88
        %v527 = vadd.s32 %v515, 96
        %v528 = vadd.s32 %v515, 104
        %v529 = vadd.s32 %v515, 112
        %v530 = vadd.s32 %v515, 120
        %v531 = vlaneseq
        %v532 = vand.u32 %v531, 127
        loop: start=0, step=1, limit=16
        $region87: #{tpu_custom_call.1} parent=77 // loop_pre_header
          _
        $region88: #{tpu_custom_call.1} parent=77 // loop_header
          %s534 = sphi 0, %s538
          %p535 = scmp.ge.s32.totalorder %s534, 16
        $region89: #{tpu_custom_call.1} parent=77 // loop_header_branch
          %537 = sbr.rel (%p535) target = $region93
        $region90: #{tpu_custom_call.1} parent=77 // loop_body
          %s539 = smul.u32 %s534, 8
          %v540 = vstv %s539
          %v541 = vadd.s32 %v532, %v540
          %vm542 = vcmp.eq.s32.totalorder %v515, %v541
          %vm543 = vcmp.eq.s32.totalorder %v516, %v541
          %vm544 = vcmp.eq.s32.totalorder %v517, %v541
          %vm545 = vcmp.eq.s32.totalorder %v518, %v541
          %vm546 = vcmp.eq.s32.totalorder %v519, %v541
          %vm547 = vcmp.eq.s32.totalorder %v520, %v541
          %vm548 = vcmp.eq.s32.totalorder %v521, %v541
          %vm549 = vcmp.eq.s32.totalorder %v522, %v541
          %vm550 = vcmp.eq.s32.totalorder %v523, %v541
          %vm551 = vcmp.eq.s32.totalorder %v524, %v541
          %vm552 = vcmp.eq.s32.totalorder %v525, %v541
          %vm553 = vcmp.eq.s32.totalorder %v526, %v541
          %vm554 = vcmp.eq.s32.totalorder %v527, %v541
          %vm555 = vcmp.eq.s32.totalorder %v528, %v541
          %vm556 = vcmp.eq.s32.totalorder %v529, %v541
          %vm557 = vcmp.eq.s32.totalorder %v530, %v541
          %v558 = vsel %vm542, 1, 0
          %v559 = vsel %vm543, 1, 0
          %v560 = vsel %vm544, 1, 0
          %v561 = vsel %vm545, 1, 0
          %v562 = vsel %vm546, 1, 0
          %v563 = vsel %vm547, 1, 0
          %v564 = vsel %vm548, 1, 0
          %v565 = vsel %vm549, 1, 0
          %v566 = vsel %vm550, 1, 0
          %v567 = vsel %vm551, 1, 0
          %v568 = vsel %vm552, 1, 0
          %v569 = vsel %vm553, 1, 0
          %v570 = vsel %vm554, 1, 0
          %v571 = vsel %vm555, 1, 0
          %v572 = vsel %vm556, 1, 0
          %v573 = vsel %vm557, 1, 0
          %v574 = vcvt.s32.f32 %v558
          %v575 = vcvt.s32.f32 %v559
          %v576 = vcvt.s32.f32 %v560
          %v577 = vcvt.s32.f32 %v561
          %v578 = vcvt.s32.f32 %v562
          %v579 = vcvt.s32.f32 %v563
          %v580 = vcvt.s32.f32 %v564
          %v581 = vcvt.s32.f32 %v565
          %v582 = vcvt.s32.f32 %v566
          %v583 = vcvt.s32.f32 %v567
          %v584 = vcvt.s32.f32 %v568
          %v585 = vcvt.s32.f32 %v569
          %v586 = vcvt.s32.f32 %v570
          %v587 = vcvt.s32.f32 %v571
          %v588 = vcvt.s32.f32 %v572
          %v589 = vcvt.s32.f32 %v573
          %590 = vmatpush.msra.mxu0 %v589
          %591 = vmatpush.msra.mxu0 %v588
          %592 = vmatpush.msra.mxu0 %v587
          %593 = vmatpush.msra.mxu0 %v586
          %594 = vmatpush.msra.mxu0 %v585
          %595 = vmatpush.msra.mxu0 %v584
          %596 = vmatpush.msra.mxu0 %v583
          %597 = vmatpush.msra.mxu0 %v582
          %598 = vmatpush.msra.mxu0 %v581
          %599 = vmatpush.msra.mxu0 %v580
          %600 = vmatpush.msra.mxu0 %v579
          %601 = vmatpush.msra.mxu0 %v578
          %602 = vmatpush.msra.mxu0 %v577
          %603 = vmatpush.msra.mxu0 %v576
          %604 = vmatpush.msra.mxu0 %v575
          %605 = vmatpush.msra.mxu0 %v574
          %606 = vmatmul.f32.gmra.mxu0 %v506
          %v607 = vpop.f32.mrf.mxu0
          %v608 = vadd.f32 0.0, %v607
          %609 = vmatmul.f32.gmra.mxu0 %v507
          %v610 = vpop.f32.mrf.mxu0
          %v611 = vadd.f32 0.0, %v610
          %612 = vmatmul.f32.gmra.mxu0 %v508
          %v613 = vpop.f32.mrf.mxu0
          %v614 = vadd.f32 0.0, %v613
          %615 = vmatmul.f32.gmra.mxu0 %v509
          %v616 = vpop.f32.mrf.mxu0
          %v617 = vadd.f32 0.0, %v616
          %618 = vmatmul.f32.gmra.mxu0 %v510
          %v619 = vpop.f32.mrf.mxu0
          %v620 = vadd.f32 0.0, %v619
          %621 = vmatmul.f32.gmra.mxu0 %v511
          %v622 = vpop.f32.mrf.mxu0
          %v623 = vadd.f32 0.0, %v622
          %624 = vmatmul.f32.gmra.mxu0 %v512
          %v625 = vpop.f32.mrf.mxu0
          %v626 = vadd.f32 0.0, %v625
          %627 = vmatmul.f32.gmra.mxu0 %v513
          %v628 = vpop.f32.mrf.mxu0
          %v629 = vadd.f32 0.0, %v628
          %630 = vdwg.mxu0
          %s631 = scalar_lea.vmem %s444, %s539
          %v632 = vld [vmem:[%s631] sm:$0xff]
          %s633 = scalar_lea.vmem %s454, %s539
          %v634 = vld [vmem:[%s633] sm:$0xff]
          %s635 = scalar_lea.vmem %s464, %s539
          %v636 = vld [vmem:[%s635] sm:$0xff]
          %v637 = vld [vmem:[#allocation2] sm:$0xff]
          %v638 = vld [vmem:[#allocation2 + $0x8] sm:$0xff]
          %v639 = vld [vmem:[#allocation2 + $0x10] sm:$0xff]
          %v640 = vld [vmem:[#allocation2 + $0x18] sm:$0xff]
          %v641 = vld [vmem:[#allocation2 + $0x20] sm:$0xff]
          %v642 = vld [vmem:[#allocation2 + $0x28] sm:$0xff]
          %v643 = vld [vmem:[#allocation2 + $0x30] sm:$0xff]
          %v644 = vld [vmem:[#allocation2 + $0x38] sm:$0xff]
          %v645 = vmul.f32 %v632, %v634
          %v646 = vperm.slane %v632, 0
          %v647 = vmul.f32 %v646, %v497
          %v648 = vmul.f32 %v646, %v498
          %v649 = vmul.f32 %v646, %v499
          %v650 = vmul.f32 %v646, %v500
          %v651 = vmul.f32 %v646, %v501
          %v652 = vmul.f32 %v646, %v502
          %v653 = vmul.f32 %v646, %v503
          %v654 = vmul.f32 %v646, %v504
          %v655 = vmul.f32 %v647, 1.442695
          %v656 = vpow.pop %v655
          %v657 = vmul.f32 %v648, 1.442695
          %v658 = vpow.pop %v657
          %v659 = vmul.f32 %v649, 1.442695
          %v660 = vpow.pop %v659
          %v661 = vmul.f32 %v650, 1.442695
          %v662 = vpow.pop %v661
          %v663 = vmul.f32 %v651, 1.442695
          %v664 = vpow.pop %v663
          %v665 = vmul.f32 %v652, 1.442695
          %v666 = vpow.pop %v665
          %v667 = vmul.f32 %v653, 1.442695
          %v668 = vpow.pop %v667
          %v669 = vmul.f32 %v654, 1.442695
          %v670 = vpow.pop %v669
          %v671 = vmul.f32 %v656, %v637
          %v672 = vmul.f32 %v658, %v638
          %v673 = vmul.f32 %v660, %v639
          %v674 = vmul.f32 %v662, %v640
          %v675 = vmul.f32 %v664, %v641
          %v676 = vmul.f32 %v666, %v642
          %v677 = vmul.f32 %v668, %v643
          %v678 = vmul.f32 %v670, %v644
          %680 = vset.pattern.permute.xlu0 0
          %681 = vperm.xlu0 %680, %v608
          %v682 = vpop.permute.xlu0 %681
          %685 = vset.pattern.permute.xlu0 0
          %686 = vperm.xlu0 %685, %v611
          %v687 = vpop.permute.xlu0 %686
          %690 = vset.pattern.permute.xlu0 0
          %691 = vperm.xlu0 %690, %v614
          %v692 = vpop.permute.xlu0 %691
          %695 = vset.pattern.permute.xlu0 0
          %696 = vperm.xlu0 %695, %v617
          %v697 = vpop.permute.xlu0 %696
          %700 = vset.pattern.permute.xlu0 0
          %701 = vperm.xlu0 %700, %v620
          %v702 = vpop.permute.xlu0 %701
          %705 = vset.pattern.permute.xlu0 0
          %706 = vperm.xlu0 %705, %v623
          %v707 = vpop.permute.xlu0 %706
          %710 = vset.pattern.permute.xlu0 0
          %711 = vperm.xlu0 %710, %v626
          %v712 = vpop.permute.xlu0 %711
          %715 = vset.pattern.permute.xlu0 0
          %716 = vperm.xlu0 %715, %v629
          %v717 = vpop.permute.xlu0 %716
          %v719 = vperm.slane %v645, 0
          %v720 = vmul.f32 %v682, %v719
          %v721 = vmul.f32 %v687, %v719
          %v722 = vmul.f32 %v692, %v719
          %v723 = vmul.f32 %v697, %v719
          %v724 = vmul.f32 %v702, %v719
          %v725 = vmul.f32 %v707, %v719
          %v726 = vmul.f32 %v712, %v719
          %v727 = vmul.f32 %v717, %v719
          %v728 = vadd.f32 %v671, %v720
          %v729 = vadd.f32 %v672, %v721
          %v730 = vadd.f32 %v673, %v722
          %v731 = vadd.f32 %v674, %v723
          %v732 = vadd.f32 %v675, %v724
          %v733 = vadd.f32 %v676, %v725
          %v734 = vadd.f32 %v677, %v726
          %v735 = vadd.f32 %v678, %v727
          %v736 = vmul.f32 %v505, %v634
          %vm737 = vcmask 523264
          %v739 = vsel %vm737, %v636, 0
          %741 = vmatpush.msra.mxu0 0.0
          %742 = vmatpush.msra.mxu0 0.0
          %743 = vmatpush.msra.mxu0 0.0
          %744 = vmatpush.msra.mxu0 0.0
          %745 = vmatpush.msra.mxu0 0.0
          %746 = vmatpush.msra.mxu0 0.0
          %747 = vmatpush.msra.mxu0 0.0
          %748 = vmatpush.msra.mxu0 0.0
          %749 = vmatpush.msra.mxu0 %v735
          %750 = vmatpush.msra.mxu0 %v734
          %751 = vmatpush.msra.mxu0 %v733
          %752 = vmatpush.msra.mxu0 %v732
          %753 = vmatpush.msra.mxu0 %v731
          %754 = vmatpush.msra.mxu0 %v730
          %755 = vmatpush.msra.mxu0 %v729
          %756 = vmatpush.msra.mxu0 %v728
          %757 = vmatmul.f32.gmra.mxu0 %v739
          %v758 = vpop.f32.mrf.mxu0
          %v759 = vadd.f32 %v736, %v758
          %760 = vdwg.mxu0
          %v761 = vperm.slane %v632, 1
          %v762 = vmul.f32 %v761, %v497
          %v763 = vmul.f32 %v761, %v498
          %v764 = vmul.f32 %v761, %v499
          %v765 = vmul.f32 %v761, %v500
          %v766 = vmul.f32 %v761, %v501
          %v767 = vmul.f32 %v761, %v502
          %v768 = vmul.f32 %v761, %v503
          %v769 = vmul.f32 %v761, %v504
          %v770 = vmul.f32 %v762, 1.442695
          %v771 = vpow.pop %v770
          %v772 = vmul.f32 %v763, 1.442695
          %v773 = vpow.pop %v772
          %v774 = vmul.f32 %v764, 1.442695
          %v775 = vpow.pop %v774
          %v776 = vmul.f32 %v765, 1.442695
          %v777 = vpow.pop %v776
          %v778 = vmul.f32 %v766, 1.442695
          %v779 = vpow.pop %v778
          %v780 = vmul.f32 %v767, 1.442695
          %v781 = vpow.pop %v780
          %v782 = vmul.f32 %v768, 1.442695
          %v783 = vpow.pop %v782
          %v784 = vmul.f32 %v769, 1.442695
          %v785 = vpow.pop %v784
          %v786 = vmul.f32 %v771, %v728
          %v787 = vmul.f32 %v773, %v729
          %v788 = vmul.f32 %v775, %v730
          %v789 = vmul.f32 %v777, %v731
          %v790 = vmul.f32 %v779, %v732
          %v791 = vmul.f32 %v781, %v733
          %v792 = vmul.f32 %v783, %v734
          %v793 = vmul.f32 %v785, %v735
          %794 = vset.pattern.permute.xlu0 1
          %795 = vperm.xlu0 %794, %v608
          %v796 = vpop.permute.xlu0 %795
          %798 = vset.pattern.permute.xlu0 1
          %799 = vperm.xlu0 %798, %v611
          %v800 = vpop.permute.xlu0 %799
          %802 = vset.pattern.permute.xlu0 1
          %803 = vperm.xlu0 %802, %v614
          %v804 = vpop.permute.xlu0 %803
          %806 = vset.pattern.permute.xlu0 1
          %807 = vperm.xlu0 %806, %v617
          %v808 = vpop.permute.xlu0 %807
          %810 = vset.pattern.permute.xlu0 1
          %811 = vperm.xlu0 %810, %v620
          %v812 = vpop.permute.xlu0 %811
          %814 = vset.pattern.permute.xlu0 1
          %815 = vperm.xlu0 %814, %v623
          %v816 = vpop.permute.xlu0 %815
          %818 = vset.pattern.permute.xlu0 1
          %819 = vperm.xlu0 %818, %v626
          %v820 = vpop.permute.xlu0 %819
          %822 = vset.pattern.permute.xlu0 1
          %823 = vperm.xlu0 %822, %v629
          %v824 = vpop.permute.xlu0 %823
          %v826 = vperm.slane %v645, 1
          %v827 = vmul.f32 %v796, %v826
          %v828 = vmul.f32 %v800, %v826
          %v829 = vmul.f32 %v804, %v826
          %v830 = vmul.f32 %v808, %v826
          %v831 = vmul.f32 %v812, %v826
          %v832 = vmul.f32 %v816, %v826
          %v833 = vmul.f32 %v820, %v826
          %v834 = vmul.f32 %v824, %v826
          %v835 = vadd.f32 %v786, %v827
          %v836 = vadd.f32 %v787, %v828
          %v837 = vadd.f32 %v788, %v829
          %v838 = vadd.f32 %v789, %v830
          %v839 = vadd.f32 %v790, %v831
          %v840 = vadd.f32 %v791, %v832
          %v841 = vadd.f32 %v792, %v833
          %v842 = vadd.f32 %v793, %v834
          %844 = vst [vmem:[#allocation1] sm:$0xff] %v634
          %s845 = scalar_lea.vmem [#allocation1], 1
          %v846 = vld [vmem:[%s845] ss:$9 sm:$0xff]
          %v848 = vmul.f32 %v505, %v846
          %v849 = vrot.slane %v636, 1
          %v850 = vsel %vm737, %v849, 0
          %852 = vmatpush.msra.mxu0 0.0
          %853 = vmatpush.msra.mxu0 0.0
          %854 = vmatpush.msra.mxu0 0.0
          %855 = vmatpush.msra.mxu0 0.0
          %856 = vmatpush.msra.mxu0 0.0
          %857 = vmatpush.msra.mxu0 0.0
          %858 = vmatpush.msra.mxu0 0.0
          %859 = vmatpush.msra.mxu0 0.0
          %860 = vmatpush.msra.mxu0 %v842
          %861 = vmatpush.msra.mxu0 %v841
          %862 = vmatpush.msra.mxu0 %v840
          %863 = vmatpush.msra.mxu0 %v839
          %864 = vmatpush.msra.mxu0 %v838
          %865 = vmatpush.msra.mxu0 %v837
          %866 = vmatpush.msra.mxu0 %v836
          %867 = vmatpush.msra.mxu0 %v835
          %868 = vmatmul.f32.gmra.mxu0 %v850
          %v869 = vpop.f32.mrf.mxu0
          %v870 = vadd.f32 %v848, %v869
          %871 = vdwg.mxu0
          %v872 = vperm.slane %v632, 2
          %v873 = vmul.f32 %v872, %v497
          %v874 = vmul.f32 %v872, %v498
          %v875 = vmul.f32 %v872, %v499
          %v876 = vmul.f32 %v872, %v500
          %v877 = vmul.f32 %v872, %v501
          %v878 = vmul.f32 %v872, %v502
          %v879 = vmul.f32 %v872, %v503
          %v880 = vmul.f32 %v872, %v504
          %v881 = vmul.f32 %v873, 1.442695
          %v882 = vpow.pop %v881
          %v883 = vmul.f32 %v874, 1.442695
          %v884 = vpow.pop %v883
          %v885 = vmul.f32 %v875, 1.442695
          %v886 = vpow.pop %v885
          %v887 = vmul.f32 %v876, 1.442695
          %v888 = vpow.pop %v887
          %v889 = vmul.f32 %v877, 1.442695
          %v890 = vpow.pop %v889
          %v891 = vmul.f32 %v878, 1.442695
          %v892 = vpow.pop %v891
          %v893 = vmul.f32 %v879, 1.442695
          %v894 = vpow.pop %v893
          %v895 = vmul.f32 %v880, 1.442695
          %v896 = vpow.pop %v895
          %v897 = vmul.f32 %v882, %v835
          %v898 = vmul.f32 %v884, %v836
          %v899 = vmul.f32 %v886, %v837
          %v900 = vmul.f32 %v888, %v838
          %v901 = vmul.f32 %v890, %v839
          %v902 = vmul.f32 %v892, %v840
          %v903 = vmul.f32 %v894, %v841
          %v904 = vmul.f32 %v896, %v842
          %905 = vset.pattern.permute.xlu0 2
          %906 = vperm.xlu0 %905, %v608
          %v907 = vpop.permute.xlu0 %906
          %909 = vset.pattern.permute.xlu0 2
          %910 = vperm.xlu0 %909, %v611
          %v911 = vpop.permute.xlu0 %910
          %913 = vset.pattern.permute.xlu0 2
          %914 = vperm.xlu0 %913, %v614
          %v915 = vpop.permute.xlu0 %914
          %917 = vset.pattern.permute.xlu0 2
          %918 = vperm.xlu0 %917, %v617
          %v919 = vpop.permute.xlu0 %918
          %921 = vset.pattern.permute.xlu0 2
          %922 = vperm.xlu0 %921, %v620
          %v923 = vpop.permute.xlu0 %922
          %925 = vset.pattern.permute.xlu0 2
          %926 = vperm.xlu0 %925, %v623
          %v927 = vpop.permute.xlu0 %926
          %929 = vset.pattern.permute.xlu0 2
          %930 = vperm.xlu0 %929, %v626
          %v931 = vpop.permute.xlu0 %930
          %933 = vset.pattern.permute.xlu0 2
          %934 = vperm.xlu0 %933, %v629
          %v935 = vpop.permute.xlu0 %934
          %v937 = vperm.slane %v645, 2
          %v938 = vmul.f32 %v907, %v937
          %v939 = vmul.f32 %v911, %v937
          %v940 = vmul.f32 %v915, %v937
          %v941 = vmul.f32 %v919, %v937
          %v942 = vmul.f32 %v923, %v937
          %v943 = vmul.f32 %v927, %v937
          %v944 = vmul.f32 %v931, %v937
          %v945 = vmul.f32 %v935, %v937
          %v946 = vadd.f32 %v897, %v938
          %v947 = vadd.f32 %v898, %v939
          %v948 = vadd.f32 %v899, %v940
          %v949 = vadd.f32 %v900, %v941
          %v950 = vadd.f32 %v901, %v942
          %v951 = vadd.f32 %v902, %v943
          %v952 = vadd.f32 %v903, %v944
          %v953 = vadd.f32 %v904, %v945
          %954 = vst [vmem:[#allocation1] sm:$0xff] %v634
          %s955 = scalar_lea.vmem [#allocation1], 2
          %v956 = vld [vmem:[%s955] ss:$9 sm:$0xff]
          %v958 = vmul.f32 %v505, %v956
          %v959 = vrot.slane %v636, 2
          %v960 = vsel %vm737, %v959, 0
          %962 = vmatpush.msra.mxu0 0.0
          %963 = vmatpush.msra.mxu0 0.0
          %964 = vmatpush.msra.mxu0 0.0
          %965 = vmatpush.msra.mxu0 0.0
          %966 = vmatpush.msra.mxu0 0.0
          %967 = vmatpush.msra.mxu0 0.0
          %968 = vmatpush.msra.mxu0 0.0
          %969 = vmatpush.msra.mxu0 0.0
          %970 = vmatpush.msra.mxu0 %v953
          %971 = vmatpush.msra.mxu0 %v952
          %972 = vmatpush.msra.mxu0 %v951
          %973 = vmatpush.msra.mxu0 %v950
          %974 = vmatpush.msra.mxu0 %v949
          %975 = vmatpush.msra.mxu0 %v948
          %976 = vmatpush.msra.mxu0 %v947
          %977 = vmatpush.msra.mxu0 %v946
          %978 = vmatmul.f32.gmra.mxu0 %v960
          %v979 = vpop.f32.mrf.mxu0
          %v980 = vadd.f32 %v958, %v979
          %981 = vdwg.mxu0
          %v982 = vperm.slane %v632, 3
          %v983 = vmul.f32 %v982, %v497
          %v984 = vmul.f32 %v982, %v498
          %v985 = vmul.f32 %v982, %v499
          %v986 = vmul.f32 %v982, %v500
          %v987 = vmul.f32 %v982, %v501
          %v988 = vmul.f32 %v982, %v502
          %v989 = vmul.f32 %v982, %v503
          %v990 = vmul.f32 %v982, %v504
          %v991 = vmul.f32 %v983, 1.442695
          %v992 = vpow.pop %v991
          %v993 = vmul.f32 %v984, 1.442695
          %v994 = vpow.pop %v993
          %v995 = vmul.f32 %v985, 1.442695
          %v996 = vpow.pop %v995
          %v997 = vmul.f32 %v986, 1.442695
          %v998 = vpow.pop %v997
          %v999 = vmul.f32 %v987, 1.442695
          %v1000 = vpow.pop %v999
          %v1001 = vmul.f32 %v988, 1.442695
          %v1002 = vpow.pop %v1001
          %v1003 = vmul.f32 %v989, 1.442695
          %v1004 = vpow.pop %v1003
          %v1005 = vmul.f32 %v990, 1.442695
          %v1006 = vpow.pop %v1005
          %v1007 = vmul.f32 %v992, %v946
          %v1008 = vmul.f32 %v994, %v947
          %v1009 = vmul.f32 %v996, %v948
          %v1010 = vmul.f32 %v998, %v949
          %v1011 = vmul.f32 %v1000, %v950
          %v1012 = vmul.f32 %v1002, %v951
          %v1013 = vmul.f32 %v1004, %v952
          %v1014 = vmul.f32 %v1006, %v953
          %1015 = vset.pattern.permute.xlu0 3
          %1016 = vperm.xlu0 %1015, %v608
          %v1017 = vpop.permute.xlu0 %1016
          %1019 = vset.pattern.permute.xlu0 3
          %1020 = vperm.xlu0 %1019, %v611
          %v1021 = vpop.permute.xlu0 %1020
          %1023 = vset.pattern.permute.xlu0 3
          %1024 = vperm.xlu0 %1023, %v614
          %v1025 = vpop.permute.xlu0 %1024
          %1027 = vset.pattern.permute.xlu0 3
          %1028 = vperm.xlu0 %1027, %v617
          %v1029 = vpop.permute.xlu0 %1028
          %1031 = vset.pattern.permute.xlu0 3
          %1032 = vperm.xlu0 %1031, %v620
          %v1033 = vpop.permute.xlu0 %1032
          %1035 = vset.pattern.permute.xlu0 3
          %1036 = vperm.xlu0 %1035, %v623
          %v1037 = vpop.permute.xlu0 %1036
          %1039 = vset.pattern.permute.xlu0 3
          %1040 = vperm.xlu0 %1039, %v626
          %v1041 = vpop.permute.xlu0 %1040
          %1043 = vset.pattern.permute.xlu0 3
          %1044 = vperm.xlu0 %1043, %v629
          %v1045 = vpop.permute.xlu0 %1044
          %v1047 = vperm.slane %v645, 3
          %v1048 = vmul.f32 %v1017, %v1047
          %v1049 = vmul.f32 %v1021, %v1047
          %v1050 = vmul.f32 %v1025, %v1047
          %v1051 = vmul.f32 %v1029, %v1047
          %v1052 = vmul.f32 %v1033, %v1047
          %v1053 = vmul.f32 %v1037, %v1047
          %v1054 = vmul.f32 %v1041, %v1047
          %v1055 = vmul.f32 %v1045, %v1047
          %v1056 = vadd.f32 %v1007, %v1048
          %v1057 = vadd.f32 %v1008, %v1049
          %v1058 = vadd.f32 %v1009, %v1050
          %v1059 = vadd.f32 %v1010, %v1051
          %v1060 = vadd.f32 %v1011, %v1052
          %v1061 = vadd.f32 %v1012, %v1053
          %v1062 = vadd.f32 %v1013, %v1054
          %v1063 = vadd.f32 %v1014, %v1055
          %1064 = vst [vmem:[#allocation1] sm:$0xff] %v634
          %s1065 = scalar_lea.vmem [#allocation1], 3
          %v1066 = vld [vmem:[%s1065] ss:$9 sm:$0xff]
          %v1068 = vmul.f32 %v505, %v1066
          %v1069 = vrot.slane %v636, 3
          %v1070 = vsel %vm737, %v1069, 0
          %1072 = vmatpush.msra.mxu0 0.0
          %1073 = vmatpush.msra.mxu0 0.0
          %1074 = vmatpush.msra.mxu0 0.0
          %1075 = vmatpush.msra.mxu0 0.0
          %1076 = vmatpush.msra.mxu0 0.0
          %1077 = vmatpush.msra.mxu0 0.0
          %1078 = vmatpush.msra.mxu0 0.0
          %1079 = vmatpush.msra.mxu0 0.0
          %1080 = vmatpush.msra.mxu0 %v1063
          %1081 = vmatpush.msra.mxu0 %v1062
          %1082 = vmatpush.msra.mxu0 %v1061
          %1083 = vmatpush.msra.mxu0 %v1060
          %1084 = vmatpush.msra.mxu0 %v1059
          %1085 = vmatpush.msra.mxu0 %v1058
          %1086 = vmatpush.msra.mxu0 %v1057
          %1087 = vmatpush.msra.mxu0 %v1056
          %1088 = vmatmul.f32.gmra.mxu0 %v1070
          %v1089 = vpop.f32.mrf.mxu0
          %v1090 = vadd.f32 %v1068, %v1089
          %1091 = vdwg.mxu0
          %v1092 = vperm.slane %v632, 4
          %v1093 = vmul.f32 %v1092, %v497
          %v1094 = vmul.f32 %v1092, %v498
          %v1095 = vmul.f32 %v1092, %v499
          %v1096 = vmul.f32 %v1092, %v500
          %v1097 = vmul.f32 %v1092, %v501
          %v1098 = vmul.f32 %v1092, %v502
          %v1099 = vmul.f32 %v1092, %v503
          %v1100 = vmul.f32 %v1092, %v504
          %v1101 = vmul.f32 %v1093, 1.442695
          %v1102 = vpow.pop %v1101
          %v1103 = vmul.f32 %v1094, 1.442695
          %v1104 = vpow.pop %v1103
          %v1105 = vmul.f32 %v1095, 1.442695
          %v1106 = vpow.pop %v1105
          %v1107 = vmul.f32 %v1096, 1.442695
          %v1108 = vpow.pop %v1107
          %v1109 = vmul.f32 %v1097, 1.442695
          %v1110 = vpow.pop %v1109
          %v1111 = vmul.f32 %v1098, 1.442695
          %v1112 = vpow.pop %v1111
          %v1113 = vmul.f32 %v1099, 1.442695
          %v1114 = vpow.pop %v1113
          %v1115 = vmul.f32 %v1100, 1.442695
          %v1116 = vpow.pop %v1115
          %v1117 = vmul.f32 %v1102, %v1056
          %v1118 = vmul.f32 %v1104, %v1057
          %v1119 = vmul.f32 %v1106, %v1058
          %v1120 = vmul.f32 %v1108, %v1059
          %v1121 = vmul.f32 %v1110, %v1060
          %v1122 = vmul.f32 %v1112, %v1061
          %v1123 = vmul.f32 %v1114, %v1062
          %v1124 = vmul.f32 %v1116, %v1063
          %1125 = vset.pattern.permute.xlu0 4
          %1126 = vperm.xlu0 %1125, %v608
          %v1127 = vpop.permute.xlu0 %1126
          %1129 = vset.pattern.permute.xlu0 4
          %1130 = vperm.xlu0 %1129, %v611
          %v1131 = vpop.permute.xlu0 %1130
          %1133 = vset.pattern.permute.xlu0 4
          %1134 = vperm.xlu0 %1133, %v614
          %v1135 = vpop.permute.xlu0 %1134
          %1137 = vset.pattern.permute.xlu0 4
          %1138 = vperm.xlu0 %1137, %v617
          %v1139 = vpop.permute.xlu0 %1138
          %1141 = vset.pattern.permute.xlu0 4
          %1142 = vperm.xlu0 %1141, %v620
          %v1143 = vpop.permute.xlu0 %1142
          %1145 = vset.pattern.permute.xlu0 4
          %1146 = vperm.xlu0 %1145, %v623
          %v1147 = vpop.permute.xlu0 %1146
          %1149 = vset.pattern.permute.xlu0 4
          %1150 = vperm.xlu0 %1149, %v626
          %v1151 = vpop.permute.xlu0 %1150
          %1153 = vset.pattern.permute.xlu0 4
          %1154 = vperm.xlu0 %1153, %v629
          %v1155 = vpop.permute.xlu0 %1154
          %v1157 = vperm.slane %v645, 4
          %v1158 = vmul.f32 %v1127, %v1157
          %v1159 = vmul.f32 %v1131, %v1157
          %v1160 = vmul.f32 %v1135, %v1157
          %v1161 = vmul.f32 %v1139, %v1157
          %v1162 = vmul.f32 %v1143, %v1157
          %v1163 = vmul.f32 %v1147, %v1157
          %v1164 = vmul.f32 %v1151, %v1157
          %v1165 = vmul.f32 %v1155, %v1157
          %v1166 = vadd.f32 %v1117, %v1158
          %v1167 = vadd.f32 %v1118, %v1159
          %v1168 = vadd.f32 %v1119, %v1160
          %v1169 = vadd.f32 %v1120, %v1161
          %v1170 = vadd.f32 %v1121, %v1162
          %v1171 = vadd.f32 %v1122, %v1163
          %v1172 = vadd.f32 %v1123, %v1164
          %v1173 = vadd.f32 %v1124, %v1165
          %1174 = vst [vmem:[#allocation1] sm:$0xff] %v634
          %s1175 = scalar_lea.vmem [#allocation1], 4
          %v1176 = vld [vmem:[%s1175] ss:$9 sm:$0xff]
          %v1178 = vmul.f32 %v505, %v1176
          %v1179 = vrot.slane %v636, 4
          %v1180 = vsel %vm737, %v1179, 0
          %1182 = vmatpush.msra.mxu0 0.0
          %1183 = vmatpush.msra.mxu0 0.0
          %1184 = vmatpush.msra.mxu0 0.0
          %1185 = vmatpush.msra.mxu0 0.0
          %1186 = vmatpush.msra.mxu0 0.0
          %1187 = vmatpush.msra.mxu0 0.0
          %1188 = vmatpush.msra.mxu0 0.0
          %1189 = vmatpush.msra.mxu0 0.0
          %1190 = vmatpush.msra.mxu0 %v1173
          %1191 = vmatpush.msra.mxu0 %v1172
          %1192 = vmatpush.msra.mxu0 %v1171
          %1193 = vmatpush.msra.mxu0 %v1170
          %1194 = vmatpush.msra.mxu0 %v1169
          %1195 = vmatpush.msra.mxu0 %v1168
          %1196 = vmatpush.msra.mxu0 %v1167
          %1197 = vmatpush.msra.mxu0 %v1166
          %1198 = vmatmul.f32.gmra.mxu0 %v1180
          %v1199 = vpop.f32.mrf.mxu0
          %v1200 = vadd.f32 %v1178, %v1199
          %1201 = vdwg.mxu0
          %v1202 = vperm.slane %v632, 5
          %v1203 = vmul.f32 %v1202, %v497
          %v1204 = vmul.f32 %v1202, %v498
          %v1205 = vmul.f32 %v1202, %v499
          %v1206 = vmul.f32 %v1202, %v500
          %v1207 = vmul.f32 %v1202, %v501
          %v1208 = vmul.f32 %v1202, %v502
          %v1209 = vmul.f32 %v1202, %v503
          %v1210 = vmul.f32 %v1202, %v504
          %v1211 = vmul.f32 %v1203, 1.442695
          %v1212 = vpow.pop %v1211
          %v1213 = vmul.f32 %v1204, 1.442695
          %v1214 = vpow.pop %v1213
          %v1215 = vmul.f32 %v1205, 1.442695
          %v1216 = vpow.pop %v1215
          %v1217 = vmul.f32 %v1206, 1.442695
          %v1218 = vpow.pop %v1217
          %v1219 = vmul.f32 %v1207, 1.442695
          %v1220 = vpow.pop %v1219
          %v1221 = vmul.f32 %v1208, 1.442695
          %v1222 = vpow.pop %v1221
          %v1223 = vmul.f32 %v1209, 1.442695
          %v1224 = vpow.pop %v1223
          %v1225 = vmul.f32 %v1210, 1.442695
          %v1226 = vpow.pop %v1225
          %v1227 = vmul.f32 %v1212, %v1166
          %v1228 = vmul.f32 %v1214, %v1167
          %v1229 = vmul.f32 %v1216, %v1168
          %v1230 = vmul.f32 %v1218, %v1169
          %v1231 = vmul.f32 %v1220, %v1170
          %v1232 = vmul.f32 %v1222, %v1171
          %v1233 = vmul.f32 %v1224, %v1172
          %v1234 = vmul.f32 %v1226, %v1173
          %1235 = vset.pattern.permute.xlu0 5
          %1236 = vperm.xlu0 %1235, %v608
          %v1237 = vpop.permute.xlu0 %1236
          %1239 = vset.pattern.permute.xlu0 5
          %1240 = vperm.xlu0 %1239, %v611
          %v1241 = vpop.permute.xlu0 %1240
          %1243 = vset.pattern.permute.xlu0 5
          %1244 = vperm.xlu0 %1243, %v614
          %v1245 = vpop.permute.xlu0 %1244
          %1247 = vset.pattern.permute.xlu0 5
          %1248 = vperm.xlu0 %1247, %v617
          %v1249 = vpop.permute.xlu0 %1248
          %1251 = vset.pattern.permute.xlu0 5
          %1252 = vperm.xlu0 %1251, %v620
          %v1253 = vpop.permute.xlu0 %1252
          %1255 = vset.pattern.permute.xlu0 5
          %1256 = vperm.xlu0 %1255, %v623
          %v1257 = vpop.permute.xlu0 %1256
          %1259 = vset.pattern.permute.xlu0 5
          %1260 = vperm.xlu0 %1259, %v626
          %v1261 = vpop.permute.xlu0 %1260
          %1263 = vset.pattern.permute.xlu0 5
          %1264 = vperm.xlu0 %1263, %v629
          %v1265 = vpop.permute.xlu0 %1264
          %v1267 = vperm.slane %v645, 5
          %v1268 = vmul.f32 %v1237, %v1267
          %v1269 = vmul.f32 %v1241, %v1267
          %v1270 = vmul.f32 %v1245, %v1267
          %v1271 = vmul.f32 %v1249, %v1267
          %v1272 = vmul.f32 %v1253, %v1267
          %v1273 = vmul.f32 %v1257, %v1267
          %v1274 = vmul.f32 %v1261, %v1267
          %v1275 = vmul.f32 %v1265, %v1267
          %v1276 = vadd.f32 %v1227, %v1268
          %v1277 = vadd.f32 %v1228, %v1269
          %v1278 = vadd.f32 %v1229, %v1270
          %v1279 = vadd.f32 %v1230, %v1271
          %v1280 = vadd.f32 %v1231, %v1272
          %v1281 = vadd.f32 %v1232, %v1273
          %v1282 = vadd.f32 %v1233, %v1274
          %v1283 = vadd.f32 %v1234, %v1275
          %1284 = vst [vmem:[#allocation1] sm:$0xff] %v634
          %s1285 = scalar_lea.vmem [#allocation1], 5
          %v1286 = vld [vmem:[%s1285] ss:$9 sm:$0xff]
          %v1288 = vmul.f32 %v505, %v1286
          %v1289 = vrot.slane %v636, 5
          %v1290 = vsel %vm737, %v1289, 0
          %1292 = vmatpush.msra.mxu0 0.0
          %1293 = vmatpush.msra.mxu0 0.0
          %1294 = vmatpush.msra.mxu0 0.0
          %1295 = vmatpush.msra.mxu0 0.0
          %1296 = vmatpush.msra.mxu0 0.0
          %1297 = vmatpush.msra.mxu0 0.0
          %1298 = vmatpush.msra.mxu0 0.0
          %1299 = vmatpush.msra.mxu0 0.0
          %1300 = vmatpush.msra.mxu0 %v1283
          %1301 = vmatpush.msra.mxu0 %v1282
          %1302 = vmatpush.msra.mxu0 %v1281
          %1303 = vmatpush.msra.mxu0 %v1280
          %1304 = vmatpush.msra.mxu0 %v1279
          %1305 = vmatpush.msra.mxu0 %v1278
          %1306 = vmatpush.msra.mxu0 %v1277
          %1307 = vmatpush.msra.mxu0 %v1276
          %1308 = vmatmul.f32.gmra.mxu0 %v1290
          %v1309 = vpop.f32.mrf.mxu0
          %v1310 = vadd.f32 %v1288, %v1309
          %1311 = vdwg.mxu0
          %v1312 = vperm.slane %v632, 6
          %v1313 = vmul.f32 %v1312, %v497
          %v1314 = vmul.f32 %v1312, %v498
          %v1315 = vmul.f32 %v1312, %v499
          %v1316 = vmul.f32 %v1312, %v500
          %v1317 = vmul.f32 %v1312, %v501
          %v1318 = vmul.f32 %v1312, %v502
          %v1319 = vmul.f32 %v1312, %v503
          %v1320 = vmul.f32 %v1312, %v504
          %v1321 = vmul.f32 %v1313, 1.442695
          %v1322 = vpow.pop %v1321
          %v1323 = vmul.f32 %v1314, 1.442695
          %v1324 = vpow.pop %v1323
          %v1325 = vmul.f32 %v1315, 1.442695
          %v1326 = vpow.pop %v1325
          %v1327 = vmul.f32 %v1316, 1.442695
          %v1328 = vpow.pop %v1327
          %v1329 = vmul.f32 %v1317, 1.442695
          %v1330 = vpow.pop %v1329
          %v1331 = vmul.f32 %v1318, 1.442695
          %v1332 = vpow.pop %v1331
          %v1333 = vmul.f32 %v1319, 1.442695
          %v1334 = vpow.pop %v1333
          %v1335 = vmul.f32 %v1320, 1.442695
          %v1336 = vpow.pop %v1335
          %v1337 = vmul.f32 %v1322, %v1276
          %v1338 = vmul.f32 %v1324, %v1277
          %v1339 = vmul.f32 %v1326, %v1278
          %v1340 = vmul.f32 %v1328, %v1279
          %v1341 = vmul.f32 %v1330, %v1280
          %v1342 = vmul.f32 %v1332, %v1281
          %v1343 = vmul.f32 %v1334, %v1282
          %v1344 = vmul.f32 %v1336, %v1283
          %1345 = vset.pattern.permute.xlu0 6
          %1346 = vperm.xlu0 %1345, %v608
          %v1347 = vpop.permute.xlu0 %1346
          %1349 = vset.pattern.permute.xlu0 6
          %1350 = vperm.xlu0 %1349, %v611
          %v1351 = vpop.permute.xlu0 %1350
          %1353 = vset.pattern.permute.xlu0 6
          %1354 = vperm.xlu0 %1353, %v614
          %v1355 = vpop.permute.xlu0 %1354
          %1357 = vset.pattern.permute.xlu0 6
          %1358 = vperm.xlu0 %1357, %v617
          %v1359 = vpop.permute.xlu0 %1358
          %1361 = vset.pattern.permute.xlu0 6
          %1362 = vperm.xlu0 %1361, %v620
          %v1363 = vpop.permute.xlu0 %1362
          %1365 = vset.pattern.permute.xlu0 6
          %1366 = vperm.xlu0 %1365, %v623
          %v1367 = vpop.permute.xlu0 %1366
          %1369 = vset.pattern.permute.xlu0 6
          %1370 = vperm.xlu0 %1369, %v626
          %v1371 = vpop.permute.xlu0 %1370
          %1373 = vset.pattern.permute.xlu0 6
          %1374 = vperm.xlu0 %1373, %v629
          %v1375 = vpop.permute.xlu0 %1374
          %v1377 = vperm.slane %v645, 6
          %v1378 = vmul.f32 %v1347, %v1377
          %v1379 = vmul.f32 %v1351, %v1377
          %v1380 = vmul.f32 %v1355, %v1377
          %v1381 = vmul.f32 %v1359, %v1377
          %v1382 = vmul.f32 %v1363, %v1377
          %v1383 = vmul.f32 %v1367, %v1377
          %v1384 = vmul.f32 %v1371, %v1377
          %v1385 = vmul.f32 %v1375, %v1377
          %v1386 = vadd.f32 %v1337, %v1378
          %v1387 = vadd.f32 %v1338, %v1379
          %v1388 = vadd.f32 %v1339, %v1380
          %v1389 = vadd.f32 %v1340, %v1381
          %v1390 = vadd.f32 %v1341, %v1382
          %v1391 = vadd.f32 %v1342, %v1383
          %v1392 = vadd.f32 %v1343, %v1384
          %v1393 = vadd.f32 %v1344, %v1385
          %1394 = vst [vmem:[#allocation1] sm:$0xff] %v634
          %s1395 = scalar_lea.vmem [#allocation1], 6
          %v1396 = vld [vmem:[%s1395] ss:$9 sm:$0xff]
          %v1398 = vmul.f32 %v505, %v1396
          %v1399 = vrot.slane %v636, 6
          %v1400 = vsel %vm737, %v1399, 0
          %1402 = vmatpush.msra.mxu0 0.0
          %1403 = vmatpush.msra.mxu0 0.0
          %1404 = vmatpush.msra.mxu0 0.0
          %1405 = vmatpush.msra.mxu0 0.0
          %1406 = vmatpush.msra.mxu0 0.0
          %1407 = vmatpush.msra.mxu0 0.0
          %1408 = vmatpush.msra.mxu0 0.0
          %1409 = vmatpush.msra.mxu0 0.0
          %1410 = vmatpush.msra.mxu0 %v1393
          %1411 = vmatpush.msra.mxu0 %v1392
          %1412 = vmatpush.msra.mxu0 %v1391
          %1413 = vmatpush.msra.mxu0 %v1390
          %1414 = vmatpush.msra.mxu0 %v1389
          %1415 = vmatpush.msra.mxu0 %v1388
          %1416 = vmatpush.msra.mxu0 %v1387
          %1417 = vmatpush.msra.mxu0 %v1386
          %1418 = vmatmul.f32.gmra.mxu0 %v1400
          %v1419 = vpop.f32.mrf.mxu0
          %v1420 = vadd.f32 %v1398, %v1419
          %1421 = vdwg.mxu0
          %v1422 = vperm.slane %v632, 7
          %v1423 = vmul.f32 %v1422, %v497
          %v1424 = vmul.f32 %v1422, %v498
          %v1425 = vmul.f32 %v1422, %v499
          %v1426 = vmul.f32 %v1422, %v500
          %v1427 = vmul.f32 %v1422, %v501
          %v1428 = vmul.f32 %v1422, %v502
          %v1429 = vmul.f32 %v1422, %v503
          %v1430 = vmul.f32 %v1422, %v504
          %v1431 = vmul.f32 %v1423, 1.442695
          %v1432 = vpow.pop %v1431
          %v1433 = vmul.f32 %v1424, 1.442695
          %v1434 = vpow.pop %v1433
          %v1435 = vmul.f32 %v1425, 1.442695
          %v1436 = vpow.pop %v1435
          %v1437 = vmul.f32 %v1426, 1.442695
          %v1438 = vpow.pop %v1437
          %v1439 = vmul.f32 %v1427, 1.442695
          %v1440 = vpow.pop %v1439
          %v1441 = vmul.f32 %v1428, 1.442695
          %v1442 = vpow.pop %v1441
          %v1443 = vmul.f32 %v1429, 1.442695
          %v1444 = vpow.pop %v1443
          %v1445 = vmul.f32 %v1430, 1.442695
          %v1446 = vpow.pop %v1445
          %v1447 = vmul.f32 %v1432, %v1386
          %v1448 = vmul.f32 %v1434, %v1387
          %v1449 = vmul.f32 %v1436, %v1388
          %v1450 = vmul.f32 %v1438, %v1389
          %v1451 = vmul.f32 %v1440, %v1390
          %v1452 = vmul.f32 %v1442, %v1391
          %v1453 = vmul.f32 %v1444, %v1392
          %v1454 = vmul.f32 %v1446, %v1393
          %1455 = vset.pattern.permute.xlu0 7
          %1456 = vperm.xlu0 %1455, %v608
          %v1457 = vpop.permute.xlu0 %1456
          %1459 = vset.pattern.permute.xlu0 7
          %1460 = vperm.xlu0 %1459, %v611
          %v1461 = vpop.permute.xlu0 %1460
          %1463 = vset.pattern.permute.xlu0 7
          %1464 = vperm.xlu0 %1463, %v614
          %v1465 = vpop.permute.xlu0 %1464
          %1467 = vset.pattern.permute.xlu0 7
          %1468 = vperm.xlu0 %1467, %v617
          %v1469 = vpop.permute.xlu0 %1468
          %1471 = vset.pattern.permute.xlu0 7
          %1472 = vperm.xlu0 %1471, %v620
          %v1473 = vpop.permute.xlu0 %1472
          %1475 = vset.pattern.permute.xlu0 7
          %1476 = vperm.xlu0 %1475, %v623
          %v1477 = vpop.permute.xlu0 %1476
          %1479 = vset.pattern.permute.xlu0 7
          %1480 = vperm.xlu0 %1479, %v626
          %v1481 = vpop.permute.xlu0 %1480
          %1483 = vset.pattern.permute.xlu0 7
          %1484 = vperm.xlu0 %1483, %v629
          %v1485 = vpop.permute.xlu0 %1484
          %v1487 = vperm.slane %v645, 7
          %v1488 = vmul.f32 %v1457, %v1487
          %v1489 = vmul.f32 %v1461, %v1487
          %v1490 = vmul.f32 %v1465, %v1487
          %v1491 = vmul.f32 %v1469, %v1487
          %v1492 = vmul.f32 %v1473, %v1487
          %v1493 = vmul.f32 %v1477, %v1487
          %v1494 = vmul.f32 %v1481, %v1487
          %v1495 = vmul.f32 %v1485, %v1487
          %v1496 = vadd.f32 %v1447, %v1488
          %v1497 = vadd.f32 %v1448, %v1489
          %v1498 = vadd.f32 %v1449, %v1490
          %v1499 = vadd.f32 %v1450, %v1491
          %v1500 = vadd.f32 %v1451, %v1492
          %v1501 = vadd.f32 %v1452, %v1493
          %v1502 = vadd.f32 %v1453, %v1494
          %v1503 = vadd.f32 %v1454, %v1495
          %1504 = vst [vmem:[#allocation1] sm:$0xff] %v634
          %s1505 = scalar_lea.vmem [#allocation1], 7
          %v1506 = vld [vmem:[%s1505] ss:$9 sm:$0xff]
          %v1508 = vmul.f32 %v505, %v1506
          %v1509 = vrot.slane %v636, 7
          %v1510 = vsel %vm737, %v1509, 0
          %1512 = vmatpush.msra.mxu0 0.0
          %1513 = vmatpush.msra.mxu0 0.0
          %1514 = vmatpush.msra.mxu0 0.0
          %1515 = vmatpush.msra.mxu0 0.0
          %1516 = vmatpush.msra.mxu0 0.0
          %1517 = vmatpush.msra.mxu0 0.0
          %1518 = vmatpush.msra.mxu0 0.0
          %1519 = vmatpush.msra.mxu0 0.0
          %1520 = vmatpush.msra.mxu0 %v1503
          %1521 = vmatpush.msra.mxu0 %v1502
          %1522 = vmatpush.msra.mxu0 %v1501
          %1523 = vmatpush.msra.mxu0 %v1500
          %1524 = vmatpush.msra.mxu0 %v1499
          %1525 = vmatpush.msra.mxu0 %v1498
          %1526 = vmatpush.msra.mxu0 %v1497
          %1527 = vmatpush.msra.mxu0 %v1496
          %1528 = vmatmul.f32.gmra.mxu0 %v1510
          %v1529 = vpop.f32.mrf.mxu0
          %v1530 = vadd.f32 %v1508, %v1529
          %1531 = vdwg.mxu0
          %v1533 = vrot.slane %v870, 7
          %v1536 = vrot.slane %v980, 6
          %v1539 = vrot.slane %v1090, 5
          %v1542 = vrot.slane %v1200, 4
          %v1545 = vrot.slane %v1310, 3
          %v1548 = vrot.slane %v1420, 2
          %v1551 = vrot.slane %v1530, 1
          %vm1553 = vcmask 1040384
          %v1554 = vsel %vm1553, %v759, %v1533
          %vm1555 = vcmask 1041408
          %v1556 = vsel %vm1555, %v1554, %v1536
          %vm1557 = vcmask 1042432
          %v1558 = vsel %vm1557, %v1556, %v1539
          %vm1559 = vcmask 1043456
          %v1560 = vsel %vm1559, %v1558, %v1542
          %vm1561 = vcmask 1044480
          %v1562 = vsel %vm1561, %v1560, %v1545
          %vm1563 = vcmask 1045504
          %v1564 = vsel %vm1563, %v1562, %v1548
          %vm1565 = vcmask 1046528
          %v1566 = vsel %vm1565, %v1564, %v1551
          %s1567 = scalar_lea.vmem %s482, %s539
          %vm1568 = vcmask 130048
          %1569 = vst.msk [vmem:[%s1567] sm:$0xff] %vm1568, %v1566
          %1570 = vst.msk [vmem:[#allocation2] sm:$0xff] %vm1568, %v1496
          %1571 = vst.msk [vmem:[#allocation2 + $0x8] sm:$0xff] %vm1568, %v1497
          %1572 = vst.msk [vmem:[#allocation2 + $0x10] sm:$0xff] %vm1568, %v1498
          %1573 = vst.msk [vmem:[#allocation2 + $0x18] sm:$0xff] %vm1568, %v1499
          %1574 = vst.msk [vmem:[#allocation2 + $0x20] sm:$0xff] %vm1568, %v1500
          %1575 = vst.msk [vmem:[#allocation2 + $0x28] sm:$0xff] %vm1568, %v1501
          %1576 = vst.msk [vmem:[#allocation2 + $0x30] sm:$0xff] %vm1568, %v1502
          %1577 = vst.msk [vmem:[#allocation2 + $0x38] sm:$0xff] %vm1568, %v1503
        $region91: #{tpu_custom_call.1} parent=77 // loop_footer
          %s538 = sadd.s32 1, %s534
        $region92: #{tpu_custom_call.1} parent=77 // loop_footer_branch
          %533 = sbr.rel target = $region88
        $region93: #{tpu_custom_call.1} parent=77 // loop_exit
          _
        %s1578 = smul.u32 16, %s22
        %p1579 = scmp.lt.s32.totalorder %s21, 3
        %s1580 = scalar_select %p1579, %s21, 3
        %p1581 = scmp.lt.s32.totalorder %s1578, 31
        %s1582 = scalar_select %p1581, %s1578, 31
        %s1583 = smul.addr %s1580, 32
        %s1584 = sadd.s32 %s1582, %s1583
        %s1585 = smul.addr %s1584, 8
        %s1586 = scalar_lea.vmem %s6, %s1585
        // Predicated region
        $region94: #{tpu_custom_call.1} parent=77 // pred_check
          %p1587 = pneg %p213
        $region95: #{tpu_custom_call.1} parent=77 // pred_check_branch
          %1589 = sbr.rel (%p1587) target = $region97
        $region96: #{tpu_custom_call.1} parent=77 // pred_region
          %s1590 = smul.u32 16, %s22
        $region97: #{tpu_custom_call.1} parent=77 // pred_fallthru
          _
      $region78: #{tpu_custom_call.1} parent=5 // pred_fallthru
        _
      %p1591 = scmp.le.s32.totalorder 2, %s12
      // Predicated region
      $region98: #{tpu_custom_call.1} parent=5 // pred_check
        %p1592 = pneg %p1591
      $region99: #{tpu_custom_call.1} parent=5 // pred_check_branch
        %1594 = sbr.rel (%p1592) target = $region101
      $region100: #{tpu_custom_call.1} parent=5 // pred_region
        %s1595 = ssub.s32 %s12, 2
        // Predicated region
        $region102: #{tpu_custom_call.1} parent=100 // pred_check
          %p1596 = pneg %p219
        $region103: #{tpu_custom_call.1} parent=100 // pred_check_branch
          %1598 = sbr.rel (%p1596) target = $region105
        $region104: #{tpu_custom_call.1} parent=100 // pred_region
          %s1599 = smul.u32 16, %s24
          %p1600 = scmp.lt.s32.totalorder %s23, 3
          %s1601 = scalar_select %p1600, %s23, 3
          %p1602 = scmp.lt.s32.totalorder %s1599, 31
          %s1603 = scalar_select %p1602, %s1599, 31
          %s1604 = smul.addr %s1601, 32
          %s1605 = sadd.s32 %s1603, %s1604
          %s1606 = smul.addr %s1605, 8
          %s1607 = scalar_lea.vmem %s6, %s1606
        $region105: #{tpu_custom_call.1} parent=100 // pred_fallthru
          _
      $region101: #{tpu_custom_call.1} parent=5 // pred_fallthru
        _
    $region6: #{tpu_custom_call.1} parent=1 // loop_footer
      %s16 = sadd.s32 1, %s12
    $region7: #{tpu_custom_call.1} parent=1 // loop_footer_branch
      %11 = sbr.rel target = $region3
    $region8: #{tpu_custom_call.1} parent=1 // loop_exit
      _

</llo_original>
